<compile_context>
chip_gen: v7x
topology: tpu7x:2x2x1
jax: 0.10.0
libtpu: 0.0.40
codegen_flags: <defaults>
</compile_context>

<pallas_src>
import jax
import jax.numpy as jnp
from jax import lax
from jax.experimental import pallas as pl
from jax.experimental.pallas import tpu as pltpu

EPS = 1e-5
LANES = 128     # channel padding target (lane-dense output stores)
PW = 8          # sublane-aligned left offset of the image inside the conv2 scratch


def _row_tile(m):
    """Largest multiple-of-8 divisor of m that is <= min(512, m // 2) (falls back to m)."""
    target = min(512, max(8, m // 2))
    for t in range(target, 7, -1):
        if t % 8 == 0 and m % t == 0:
            return t
    return m


# ------------------------------ Pallas kernels ------------------------------

def _conv1_down_kernel(p_ref, w_ref, y_ref, st_ref):
    # p_ref: (TM, 9*Cin) bf16 patches; w_ref: (9*Cin, 2*Cpad) bf16 fused [conv1 | conv_down].
    y = jnp.dot(p_ref[...], w_ref[...], preferred_element_type=jnp.float32)
    y_ref[...] = y
    sums = jnp.sum(y, axis=0, keepdims=True)          # per-tile BN partial stats
    sqs = jnp.sum(y * y, axis=0, keepdims=True)       # (single pass: E[y^2] form)
    st_ref[0] = jnp.concatenate([sums, sqs], axis=0)


def _make_conv2_kernel(ho, wo, cpad):
    hw = ho * wo

    def kernel(y1_ref, s1_ref, w2_ref, y2_ref, st_ref, c1p_ref):
        # bn1 + relu applied in VMEM (scale/shift precomputed from pass-1 stats).
        c1 = jnp.maximum(y1_ref[...] * s1_ref[0:1, :] + s1_ref[1:2, :], 0.0)
        # zero-padded c1 lives in a VMEM scratch; image starts at sublane-aligned column PW.
        c1p_ref[...] = jnp.zeros_like(c1p_ref)
        c1p_ref[pl.ds(1, ho), pl.ds(PW, wo), :] = c1.reshape(ho, wo, cpad)
        # 3x3 conv2 = 9 shifted bf16 MXU matmuls accumulated in f32 (no 9x im2col in HBM).
        acc = jnp.zeros((hw, cpad), jnp.float32)
        for t in range(9):
            dy, dx = t // 3, t % 3
            win = c1p_ref[pl.ds(dy, ho), pl.ds(PW - 1 + dx, wo), :]
            acc = acc + jnp.dot(win.reshape(hw, cpad).astype(jnp.bfloat16),
                                w2_ref[t], preferred_element_type=jnp.float32)
        y2_ref[0] = acc
        sums = jnp.sum(acc, axis=0, keepdims=True)
        sqs = jnp.sum(acc * acc, axis=0, keepdims=True)
        st_ref[0] = jnp.concatenate([sums, sqs], axis=0)

    return kernel


def _bn_add_relu_kernel(y2_ref, yd_ref, c_ref, o_ref):
    # out = relu(bn2(y2) + bn_down(yd)) with BN folded into per-channel scale/shift (pure VPU FMAs).
    c = c_ref[...]
    o_ref[...] = jnp.maximum(y2_ref[...] * c[0:1, :] + c[1:2, :]
                             + yd_ref[...] * c[2:3, :] + c[3:4, :], 0.0)


# --------------------------------- JAX glue ---------------------------------

def _im2col_s2(x_nhwc):
    """3x3 / stride-2 / pad-1 patches: [N*Ho*Wo, 9*Cin], feature order (dy, dx, cin)."""
    n, h, w, c = x_nhwc.shape
    ho, wo = (h - 1) // 2 + 1, (w - 1) // 2 + 1
    xp = jnp.pad(x_nhwc, ((0, 0), (1, 1), (1, 1), (0, 0)))
    cols = [xp[:, dy:dy + 2 * (ho - 1) + 1:2, dx:dx + 2 * (wo - 1) + 1:2, :]
            for dy in range(3) for dx in range(3)]
    return jnp.concatenate(cols, axis=-1).reshape(n * ho * wo, 9 * c), (n, ho, wo)


def _prep_weights(params, cin, cout, cpad):
    # Fused [conv1 | conv_down] weight (9*Cin, 2*Cpad): conv_down's 1x1/stride-2 taps coincide
    # with conv1's central (dy=1, dx=1) patch columns, so one matmul computes both branches.
    w1_2d = jnp.transpose(params["w1"], (2, 3, 1, 0)).reshape(9 * cin, cout)
    wd_2d = params["wd"][:, :, 0, 0].T                                 # (Cin, Cout)
    w1d = jnp.zeros((9 * cin, 2 * cpad), jnp.float32)
    w1d = w1d.at[:, :cout].set(w1_2d)
    w1d = w1d.at[4 * cin:5 * cin, cpad:cpad + cout].set(wd_2d)
    # conv2 weight as 9 taps of (Cpad, Cpad).
    w2 = jnp.transpose(params["w2"], (2, 3, 1, 0)).reshape(9, cout, cout)
    w2p = jnp.zeros((9, cpad, cpad), jnp.float32).at[:, :cout, :cout].set(w2)
    return w1d.astype(jnp.bfloat16), w2p.astype(jnp.bfloat16)


def _pad_c(v, cpad):
    return jnp.zeros((cpad,), jnp.float32).at[:v.shape[0]].set(v.astype(jnp.float32))


def _bn_scale_shift(s, sq, m, gamma, beta):
    mean = s / m
    var = jnp.maximum(sq / m - mean * mean, 0.0)
    scale = gamma * lax.rsqrt(var + EPS)
    return scale, beta - scale * mean


def down_block_forward(x_nchw, params):
    """x_nchw: [N, Cin, H, W] float32  ->  [N, 2*Cin, H/2, W/2] float32"""
    n, cin, h, w = x_nchw.shape
    cout = params["w1"].shape[0]
    cpad = ((cout + LANES - 1) // LANES) * LANES
    xb = jnp.transpose(x_nchw, (0, 2, 3, 1)).astype(jnp.bfloat16)      # NHWC, bf16 activations

    # TODO(synk): conv1 patch extraction is still JAX-side im2col (2.25x expansion at stride 2,
    # halved by bf16); an in-kernel space-to-depth formulation would remove it entirely.
    p1, (_, ho, wo) = _im2col_s2(xb)
    hw, m = ho * wo, n * ho * wo
    assert wo % 8 == 0, "conv2 kernel assumes Wo % 8 == 0 (layout-preserving reshapes)"
    w1d_bf16, w2p_bf16 = _prep_weights(params, cin, cout, cpad)
    k1 = 9 * cin

    # ---- pass 1: fused conv1 + conv_down (row-tiled bf16 MXU) + per-tile BN partial stats ----
    tm1 = _row_tile(m)
    nt1 = m // tm1
    y1d, st1 = pl.pallas_call(
        _conv1_down_kernel,
        out_shape=(jax.ShapeDtypeStruct((m, 2 * cpad), jnp.float32),
                   jax.ShapeDtypeStruct((nt1, 2, 2 * cpad), jnp.float32)),
        grid=(nt1,),
        in_specs=[pl.BlockSpec((tm1, k1), lambda i: (i, 0)),
                  pl.BlockSpec((k1, 2 * cpad), lambda i: (0, 0))],       # weight stays resident
        out_specs=(pl.BlockSpec((tm1, 2 * cpad), lambda i: (i, 0)),
                   pl.BlockSpec((1, 2, 2 * cpad), lambda i: (i, 0, 0))),
        compiler_params=pltpu.CompilerParams(dimension_semantics=("parallel",)),
    )(p1, w1d_bf16)

    tot1 = jnp.sum(st1, axis=0)                                          # (2, 2*Cpad)
    scale1, shift1 = _bn_scale_shift(tot1[0, :cpad], tot1[1, :cpad], m,
                                     _pad_c(params["g1"], cpad), _pad_c(params["be1"], cpad))
    scaled, shiftd = _bn_scale_shift(tot1[0, cpad:], tot1[1, cpad:], m,
                                     _pad_c(params["gd"], cpad), _pad_c(params["bed"], cpad))
    s1 = jnp.stack([scale1, shift1])                                     # (2, Cpad)

    # ---- pass 2: bn1+relu in VMEM, conv2 as 9 shifted MXU matmuls, per-image BN2 stats ----
    y2, st2 = pl.pallas_call(
        _make_conv2_kernel(ho, wo, cpad),
        out_shape=(jax.ShapeDtypeStruct((n, hw, cpad), jnp.float32),
                   jax.ShapeDtypeStruct((n, 2, cpad), jnp.float32)),
        grid=(n,),
        in_specs=[pl.BlockSpec((hw, cpad), lambda b: (b, 0)),            # y1 = first Cpad cols of y1d
                  pl.BlockSpec((2, cpad), lambda b: (0, 0)),
                  pl.BlockSpec((9, cpad, cpad), lambda b: (0, 0, 0))],
        out_specs=(pl.BlockSpec((1, hw, cpad), lambda b: (b, 0, 0)),
                   pl.BlockSpec((1, 2, cpad), lambda b: (b, 0, 0))),
        scratch_shapes=[pltpu.VMEM((ho + 2, wo + 2 * PW, cpad), jnp.float32)],
        compiler_params=pltpu.CompilerParams(dimension_semantics=("parallel",)),
    )(y1d, s1, w2p_bf16)

    tot2 = jnp.sum(st2, axis=0)                                          # (2, Cpad)
    scale2, shift2 = _bn_scale_shift(tot2[0], tot2[1], m,
                                     _pad_c(params["g2"], cpad), _pad_c(params["be2"], cpad))
    coef = jnp.stack([scale2, shift2, scaled, shiftd])                   # (4, Cpad)

    # ---- pass 3: out = relu(bn2(y2) + bn_down(yd)), row-tiled, lane-dense stores ----
    tm3 = _row_tile(m)
    nt3 = m // tm3
    out_flat = pl.pallas_call(
        _bn_add_relu_kernel,
        out_shape=jax.ShapeDtypeStruct((m, cpad), jnp.float32),
        grid=(nt3,),
        in_specs=[pl.BlockSpec((tm3, cpad), lambda i: (i, 0)),
                  pl.BlockSpec((tm3, cpad), lambda i: (i, 1)),           # yd = second Cpad cols
                  pl.BlockSpec((4, cpad), lambda i: (0, 0))],
        out_specs=pl.BlockSpec((tm3, cpad), lambda i: (i, 0)),
        compiler_params=pltpu.CompilerParams(dimension_semantics=("parallel",)),
    )(y2.reshape(m, cpad), y1d, coef)

    out = out_flat.reshape(n, ho, wo, cpad)[..., :cout]
    return jnp.transpose(out, (0, 3, 1, 2))                              # back to NCHW


# ------------------------- pure-JAX reference check -------------------------

def _ref_bn(y, g, b):
    mu = jnp.mean(y, axis=(0, 2, 3), keepdims=True)
    var = jnp.mean((y - mu) ** 2, axis=(0, 2, 3), keepdims=True)
    return g[None, :, None, None] * (y - mu) * lax.rsqrt(var + EPS) + b[None, :, None, None]


def ref_forward(x, p):
    dn = ("NCHW", "OIHW", "NCHW")
    y1 = lax.conv_general_dilated(x, p["w1"], (2, 2), ((1, 1), (1, 1)),
                                  dimension_numbers=dn) + p["b1"][None, :, None, None]
    c1 = jnp.maximum(_ref_bn(y1, p["g1"], p["be1"]), 0.0)
    y2 = lax.conv_general_dilated(c1, p["w2"], (1, 1), ((1, 1), (1, 1)),
                                  dimension_numbers=dn) + p["b2"][None, :, None, None]
    c2 = _ref_bn(y2, p["g2"], p["be2"])
    yd = lax.conv_general_dilated(x, p["wd"], (2, 2), ((0, 0), (0, 0)),
                                  dimension_numbers=dn)
    down = _ref_bn(yd, p["gd"], p["bed"])
    return jnp.maximum(down + c2, 0.0)


# ----------------------------------- main -----------------------------------

if __name__ == "__main__":
    key = jax.random.PRNGKey(0)
    N, Cin, H, W = 2, 4, 16, 16
    Cout = Cin * 2

    ks = jax.random.split(key, 8)
    params = {
        # conv1: Conv2d(Cin, Cout, 3, stride=2, pad=1)
        "w1": 0.1 * jax.random.normal(ks[0], (Cout, Cin, 3, 3), jnp.float32),
        "b1": 0.1 * jax.random.normal(ks[1], (Cout,), jnp.float32),      # cancelled by bn1
        # conv2: Conv2d(Cout, Cout, 3, stride=1, pad=1)
        "w2": 0.1 * jax.random.normal(ks[2], (Cout, Cout, 3, 3), jnp.float32),
        "b2": 0.1 * jax.random.normal(ks[3], (Cout,), jnp.float32),      # cancelled by bn2
        # conv_down: Conv2d(Cin, Cout, 1, stride=2, bias=False)
        "wd": 0.1 * jax.random.normal(ks[4], (Cout, Cin, 1, 1), jnp.float32),
        # BatchNorm params (PyTorch init: weight=1, bias=0; bn_down explicitly 1/0)
        "g1": jnp.ones((Cout,), jnp.float32), "be1": jnp.zeros((Cout,), jnp.float32),
        "g2": jnp.ones((Cout,), jnp.float32), "be2": jnp.zeros((Cout,), jnp.float32),
        "gd": jnp.ones((Cout,), jnp.float32), "bed": jnp.zeros((Cout,), jnp.float32),
    }

    x = jax.random.normal(ks[5], (N, Cin, H, W), jnp.float32)

    fwd = jax.jit(down_block_forward)
    out = jax.block_until_ready(fwd(x, params))
    assert out.shape == (N, Cout, H // 2, W // 2), out.shape

    ref = jax.block_until_ready(ref_forward(x, params))
    diff = jnp.abs(out - ref)
    # tolerance accounts for bf16 MXU operands (f32 accumulation); structure errors would be O(1)
    ok = bool(jnp.all(diff <= 2e-2 + 2e-2 * jnp.abs(ref)))
    assert ok, f"mismatch vs reference: max abs err {float(jnp.max(diff))}"

    print("KERNEL_OK")
</pallas_src>

<mosaic_0001>
module attributes {stable_mosaic.version = 11 : i64} {
  func.func @_conv1_down_kernel(%arg0: i32, %arg1: memref<64x36xbf16, #tpu.memory_space<vmem>>, %arg2: memref<36x256xbf16, #tpu.memory_space<vmem>>, %arg3: memref<64x256xf32, #tpu.memory_space<vmem>>, %arg4: memref<1x2x256xf32, #tpu.memory_space<vmem>>) attributes {dimension_semantics = [#tpu.dimension_semantics<parallel>], iteration_bounds = array<i64: 2>, scalar_prefetch = 0 : i64, scratch_operands = 0 : i64, tpu.core_type = #tpu.core_type<tc>, window_params = [{transform_indices = @transform_0, window_bounds = array<i64: 64, 36>}, {pipeline_mode = #tpu.pipeline_mode<synchronous>, transform_indices = @transform_1, window_bounds = array<i64: 36, 256>}, {transform_indices = @transform_2, window_bounds = array<i64: 64, 256>}, {transform_indices = @transform_3, window_bounds = array<i64: 1, 2, 256>}]} {
    %c0 = arith.constant 0 : index
    %c0_0 = arith.constant 0 : index
    %0 = vector.load %arg1[%c0, %c0_0] : memref<64x36xbf16, #tpu.memory_space<vmem>>, vector<64x36xbf16>
    %c0_1 = arith.constant 0 : index
    %c0_2 = arith.constant 0 : index
    %1 = vector.load %arg2[%c0_1, %c0_2] : memref<36x256xbf16, #tpu.memory_space<vmem>>, vector<36x256xbf16>
    %cst = arith.constant dense<0.000000e+00> : vector<64x256xf32>
    %2 = tpu.matmul %0, %1, %cst {dimension_numbers = #tpu.dot_dimension_numbers<[1], [0], [0], [1], [0, 0, 1, 1], [], []>} : vector<64x36xbf16>, vector<36x256xbf16>, vector<64x256xf32> -> vector<64x256xf32>
    %c0_3 = arith.constant 0 : index
    %c0_4 = arith.constant 0 : index
    %3 = vector.load %arg3[%c0_3, %c0_4] : memref<64x256xf32, #tpu.memory_space<vmem>>, vector<64x256xf32>
    tpu.vector_store %arg3[%c0_3, %c0_4], %2 {strides = array<i32>} : memref<64x256xf32, #tpu.memory_space<vmem>>, vector<64x256xf32>,
    %cst_5 = arith.constant dense<0.000000e+00> : vector<256xf32>
    %4 = vector.multi_reduction <add>, %2, %cst_5 [0] : vector<64x256xf32> to vector<256xf32>
    %5 = vector.shape_cast %4 : vector<256xf32> to vector<1x256xf32>
    %6 = arith.mulf %2, %2 : vector<64x256xf32>
    %cst_6 = arith.constant dense<0.000000e+00> : vector<256xf32>
    %7 = vector.multi_reduction <add>, %6, %cst_6 [0] : vector<64x256xf32> to vector<256xf32>
    %8 = vector.shape_cast %7 : vector<256xf32> to vector<1x256xf32>
    %9 = tpu.concatenate %5, %8 in 0 : vector<1x256xf32>, vector<1x256xf32> -> vector<2x256xf32>
    %c0_7 = arith.constant 0 : index
    %c0_8 = arith.constant 0 : index
    %c0_9 = arith.constant 0 : index
    %10 = vector.load %arg4[%c0_7, %c0_8, %c0_9] : memref<1x2x256xf32, #tpu.memory_space<vmem>>, vector<1x2x256xf32>
    %11 = vector.shape_cast %10 : vector<1x2x256xf32> to vector<2x256xf32>
    %12 = vector.shape_cast %9 : vector<2x256xf32> to vector<1x2x256xf32>
    tpu.vector_store %arg4[%c0_7, %c0_8, %c0_9], %12 {strides = array<i32>} : memref<1x2x256xf32, #tpu.memory_space<vmem>>, vector<1x2x256xf32>,
    return
  }
  func.func @transform_0(%arg0: i32) -> (i32, i32) {
    %c0_i32 = arith.constant 0 : i32
    %c0_i32_0 = arith.constant 0 : i32
    return %arg0, %c0_i32 : i32, i32
  }
  func.func @transform_1(%arg0: i32) -> (i32, i32) {
    %c0_i32 = arith.constant 0 : i32
    %c0_i32_0 = arith.constant 0 : i32
    %c0_i32_1 = arith.constant 0 : i32
    return %c0_i32, %c0_i32_0 : i32, i32
  }
  func.func @transform_2(%arg0: i32) -> (i32, i32) {
    %c0_i32 = arith.constant 0 : i32
    %c0_i32_0 = arith.constant 0 : i32
    return %arg0, %c0_i32 : i32, i32
  }
  func.func @transform_3(%arg0: i32) -> (i32, i32, i32) {
    %c0_i32 = arith.constant 0 : i32
    %c0_i32_0 = arith.constant 0 : i32
    %c0_i32_1 = arith.constant 0 : i32
    return %arg0, %c0_i32, %c0_i32_0 : i32, i32, i32
  }
}

module attributes {stable_mosaic.version = 11 : i64} {
  func.func @kernel(%arg0: i32, %arg1: memref<64x128xf32, #tpu.memory_space<vmem>>, %arg2: memref<2x128xf32, #tpu.memory_space<vmem>>, %arg3: memref<9x128x128xbf16, #tpu.memory_space<vmem>>, %arg4: memref<1x64x128xf32, #tpu.memory_space<vmem>>, %arg5: memref<1x2x128xf32, #tpu.memory_space<vmem>>, %arg6: memref<10x24x128xf32, #tpu.memory_space<vmem>>) attributes {dimension_semantics = [#tpu.dimension_semantics<parallel>], iteration_bounds = array<i64: 2>, scalar_prefetch = 0 : i64, scratch_operands = 1 : i64, tpu.core_type = #tpu.core_type<tc>, window_params = [{transform_indices = @transform_0, window_bounds = array<i64: 64, 128>}, {pipeline_mode = #tpu.pipeline_mode<synchronous>, transform_indices = @transform_1, window_bounds = array<i64: 2, 128>}, {pipeline_mode = #tpu.pipeline_mode<synchronous>, transform_indices = @transform_2, window_bounds = array<i64: 9, 128, 128>}, {transform_indices = @transform_3, window_bounds = array<i64: 1, 64, 128>}, {transform_indices = @transform_4, window_bounds = array<i64: 1, 2, 128>}]} {
    %c0 = arith.constant 0 : index
    %c0_0 = arith.constant 0 : index
    %0 = vector.load %arg1[%c0, %c0_0] : memref<64x128xf32, #tpu.memory_space<vmem>>, vector<64x128xf32>
    %c0_1 = arith.constant 0 : index
    %c0_2 = arith.constant 0 : index
    %1 = vector.load %arg2[%c0_1, %c0_2] : memref<2x128xf32, #tpu.memory_space<vmem>>, vector<1x128xf32>
    %2 = vector.broadcast %1 : vector<1x128xf32> to vector<64x128xf32>
    %3 = arith.mulf %0, %2 : vector<64x128xf32>
    %c1 = arith.constant 1 : index
    %c0_3 = arith.constant 0 : index
    %4 = vector.load %arg2[%c1, %c0_3] : memref<2x128xf32, #tpu.memory_space<vmem>>, vector<1x128xf32>
    %5 = vector.broadcast %4 : vector<1x128xf32> to vector<64x128xf32>
    %6 = arith.addf %3, %5 : vector<64x128xf32>
    %cst = arith.constant 0.000000e+00 : f32
    %7 = vector.broadcast %cst : f32 to vector<64x128xf32>
    %8 = arith.maximumf %6, %7 : vector<64x128xf32>
    %cst_4 = arith.constant 0.000000e+00 : f32
    %9 = vector.broadcast %cst_4 : f32 to vector<10x24x128xf32>
    %c0_5 = arith.constant 0 : index
    %c0_6 = arith.constant 0 : index
    %c0_7 = arith.constant 0 : index
    %10 = vector.load %arg6[%c0_5, %c0_6, %c0_7] : memref<10x24x128xf32, #tpu.memory_space<vmem>>, vector<10x24x128xf32>
    tpu.vector_store %arg6[%c0_5, %c0_6, %c0_7], %9 {strides = array<i32>} : memref<10x24x128xf32, #tpu.memory_space<vmem>>, vector<10x24x128xf32>,
    %11 = vector.shape_cast %8 : vector<64x128xf32> to vector<8x8x128xf32>
    %c1_8 = arith.constant 1 : index
    %c8 = arith.constant 8 : index
    %c0_9 = arith.constant 0 : index
    %12 = vector.load %arg6[%c1_8, %c8, %c0_9] : memref<10x24x128xf32, #tpu.memory_space<vmem>>, vector<8x8x128xf32>
    tpu.vector_store %arg6[%c1_8, %c8, %c0_9], %11 {strides = array<i32>} : memref<10x24x128xf32, #tpu.memory_space<vmem>>, vector<8x8x128xf32>,
    %cst_10 = arith.constant 0.000000e+00 : f32
    %13 = vector.broadcast %cst_10 : f32 to vector<64x128xf32>
    %c0_11 = arith.constant 0 : index
    %c7 = arith.constant 7 : index
    %c0_12 = arith.constant 0 : index
    %14 = vector.load %arg6[%c0_11, %c7, %c0_12] : memref<10x24x128xf32, #tpu.memory_space<vmem>>, vector<8x8x128xf32>
    %15 = vector.shape_cast %14 : vector<8x8x128xf32> to vector<64x128xf32>
    %16 = arith.truncf %15 : vector<64x128xf32> to vector<64x128xbf16>
    %c0_13 = arith.constant 0 : index
    %c0_14 = arith.constant 0 : index
    %c0_15 = arith.constant 0 : index
    %17 = vector.load %arg3[%c0_13, %c0_14, %c0_15] : memref<9x128x128xbf16, #tpu.memory_space<vmem>>, vector<1x128x128xbf16>
    %18 = vector.shape_cast %17 : vector<1x128x128xbf16> to vector<128x128xbf16>
    %cst_16 = arith.constant dense<0.000000e+00> : vector<64x128xf32>
    %19 = tpu.matmul %16, %18, %cst_16 {dimension_numbers = #tpu.dot_dimension_numbers<[1], [0], [0], [1], [0, 0, 1, 1], [], []>} : vector<64x128xbf16>, vector<128x128xbf16>, vector<64x128xf32> -> vector<64x128xf32>
    %20 = arith.addf %13, %19 : vector<64x128xf32>
    %c0_17 = arith.constant 0 : index
    %c8_18 = arith.constant 8 : index
    %c0_19 = arith.constant 0 : index
    %21 = vector.load %arg6[%c0_17, %c8_18, %c0_19] : memref<10x24x128xf32, #tpu.memory_space<vmem>>, vector<8x8x128xf32>
    %22 = vector.shape_cast %21 : vector<8x8x128xf32> to vector<64x128xf32>
    %23 = arith.truncf %22 : vector<64x128xf32> to vector<64x128xbf16>
    %c1_20 = arith.constant 1 : index
    %c0_21 = arith.constant 0 : index
    %c0_22 = arith.constant 0 : index
    %24 = vector.load %arg3[%c1_20, %c0_21, %c0_22] : memref<9x128x128xbf16, #tpu.memory_space<vmem>>, vector<1x128x128xbf16>
    %25 = vector.shape_cast %24 : vector<1x128x128xbf16> to vector<128x128xbf16>
    %cst_23 = arith.constant dense<0.000000e+00> : vector<64x128xf32>
    %26 = tpu.matmul %23, %25, %cst_23 {dimension_numbers = #tpu.dot_dimension_numbers<[1], [0], [0], [1], [0, 0, 1, 1], [], []>} : vector<64x128xbf16>, vector<128x128xbf16>, vector<64x128xf32> -> vector<64x128xf32>
    %27 = arith.addf %20, %26 : vector<64x128xf32>
    %c0_24 = arith.constant 0 : index
    %c9 = arith.constant 9 : index
    %c0_25 = arith.constant 0 : index
    %28 = vector.load %arg6[%c0_24, %c9, %c0_25] : memref<10x24x128xf32, #tpu.memory_space<vmem>>, vector<8x8x128xf32>
    %29 = vector.shape_cast %28 : vector<8x8x128xf32> to vector<64x128xf32>
    %30 = arith.truncf %29 : vector<64x128xf32> to vector<64x128xbf16>
    %c2 = arith.constant 2 : index
    %c0_26 = arith.constant 0 : index
    %c0_27 = arith.constant 0 : index
    %31 = vector.load %arg3[%c2, %c0_26, %c0_27] : memref<9x128x128xbf16, #tpu.memory_space<vmem>>, vector<1x128x128xbf16>
    %32 = vector.shape_cast %31 : vector<1x128x128xbf16> to vector<128x128xbf16>
    %cst_28 = arith.constant dense<0.000000e+00> : vector<64x128xf32>
    %33 = tpu.matmul %30, %32, %cst_28 {dimension_numbers = #tpu.dot_dimension_numbers<[1], [0], [0], [1], [0, 0, 1, 1], [], []>} : vector<64x128xbf16>, vector<128x128xbf16>, vector<64x128xf32> -> vector<64x128xf32>
    %34 = arith.addf %27, %33 : vector<64x128xf32>
    %c1_29 = arith.constant 1 : index
    %c7_30 = arith.constant 7 : index
    %c0_31 = arith.constant 0 : index
    %35 = vector.load %arg6[%c1_29, %c7_30, %c0_31] : memref<10x24x128xf32, #tpu.memory_space<vmem>>, vector<8x8x128xf32>
    %36 = vector.shape_cast %35 : vector<8x8x128xf32> to vector<64x128xf32>
    %37 = arith.truncf %36 : vector<64x128xf32> to vector<64x128xbf16>
    %c3 = arith.constant 3 : index
    %c0_32 = arith.constant 0 : index
    %c0_33 = arith.constant 0 : index
    %38 = vector.load %arg3[%c3, %c0_32, %c0_33] : memref<9x128x128xbf16, #tpu.memory_space<vmem>>, vector<1x128x128xbf16>
    %39 = vector.shape_cast %38 : vector<1x128x128xbf16> to vector<128x128xbf16>
    %cst_34 = arith.constant dense<0.000000e+00> : vector<64x128xf32>
    %40 = tpu.matmul %37, %39, %cst_34 {dimension_numbers = #tpu.dot_dimension_numbers<[1], [0], [0], [1], [0, 0, 1, 1], [], []>} : vector<64x128xbf16>, vector<128x128xbf16>, vector<64x128xf32> -> vector<64x128xf32>
    %41 = arith.addf %34, %40 : vector<64x128xf32>
    %c1_35 = arith.constant 1 : index
    %c8_36 = arith.constant 8 : index
    %c0_37 = arith.constant 0 : index
    %42 = vector.load %arg6[%c1_35, %c8_36, %c0_37] : memref<10x24x128xf32, #tpu.memory_space<vmem>>, vector<8x8x128xf32>
    %43 = vector.shape_cast %42 : vector<8x8x128xf32> to vector<64x128xf32>
    %44 = arith.truncf %43 : vector<64x128xf32> to vector<64x128xbf16>
    %c4 = arith.constant 4 : index
    %c0_38 = arith.constant 0 : index
    %c0_39 = arith.constant 0 : index
    %45 = vector.load %arg3[%c4, %c0_38, %c0_39] : memref<9x128x128xbf16, #tpu.memory_space<vmem>>, vector<1x128x128xbf16>
    %46 = vector.shape_cast %45 : vector<1x128x128xbf16> to vector<128x128xbf16>
    %cst_40 = arith.constant dense<0.000000e+00> : vector<64x128xf32>
    %47 = tpu.matmul %44, %46, %cst_40 {dimension_numbers = #tpu.dot_dimension_numbers<[1], [0], [0], [1], [0, 0, 1, 1], [], []>} : vector<64x128xbf16>, vector<128x128xbf16>, vector<64x128xf32> -> vector<64x128xf32>
    %48 = arith.addf %41, %47 : vector<64x128xf32>
    %c1_41 = arith.constant 1 : index
    %c9_42 = arith.constant 9 : index
    %c0_43 = arith.constant 0 : index
    %49 = vector.load %arg6[%c1_41, %c9_42, %c0_43] : memref<10x24x128xf32, #tpu.memory_space<vmem>>, vector<8x8x128xf32>
    %50 = vector.shape_cast %49 : vector<8x8x128xf32> to vector<64x128xf32>
    %51 = arith.truncf %50 : vector<64x128xf32> to vector<64x128xbf16>
    %c5 = arith.constant 5 : index
    %c0_44 = arith.constant 0 : index
    %c0_45 = arith.constant 0 : index
    %52 = vector.load %arg3[%c5, %c0_44, %c0_45] : memref<9x128x128xbf16, #tpu.memory_space<vmem>>, vector<1x128x128xbf16>
    %53 = vector.shape_cast %52 : vector<1x128x128xbf16> to vector<128x128xbf16>
    %cst_46 = arith.constant dense<0.000000e+00> : vector<64x128xf32>
    %54 = tpu.matmul %51, %53, %cst_46 {dimension_numbers = #tpu.dot_dimension_numbers<[1], [0], [0], [1], [0, 0, 1, 1], [], []>} : vector<64x128xbf16>, vector<128x128xbf16>, vector<64x128xf32> -> vector<64x128xf32>
    %55 = arith.addf %48, %54 : vector<64x128xf32>
    %c2_47 = arith.constant 2 : index
    %c7_48 = arith.constant 7 : index
    %c0_49 = arith.constant 0 : index
    %56 = vector.load %arg6[%c2_47, %c7_48, %c0_49] : memref<10x24x128xf32, #tpu.memory_space<vmem>>, vector<8x8x128xf32>
    %57 = vector.shape_cast %56 : vector<8x8x128xf32> to vector<64x128xf32>
    %58 = arith.truncf %57 : vector<64x128xf32> to vector<64x128xbf16>
    %c6 = arith.constant 6 : index
    %c0_50 = arith.constant 0 : index
    %c0_51 = arith.constant 0 : index
    %59 = vector.load %arg3[%c6, %c0_50, %c0_51] : memref<9x128x128xbf16, #tpu.memory_space<vmem>>, vector<1x128x128xbf16>
    %60 = vector.shape_cast %59 : vector<1x128x128xbf16> to vector<128x128xbf16>
    %cst_52 = arith.constant dense<0.000000e+00> : vector<64x128xf32>
    %61 = tpu.matmul %58, %60, %cst_52 {dimension_numbers = #tpu.dot_dimension_numbers<[1], [0], [0], [1], [0, 0, 1, 1], [], []>} : vector<64x128xbf16>, vector<128x128xbf16>, vector<64x128xf32> -> vector<64x128xf32>
    %62 = arith.addf %55, %61 : vector<64x128xf32>
    %c2_53 = arith.constant 2 : index
    %c8_54 = arith.constant 8 : index
    %c0_55 = arith.constant 0 : index
    %63 = vector.load %arg6[%c2_53, %c8_54, %c0_55] : memref<10x24x128xf32, #tpu.memory_space<vmem>>, vector<8x8x128xf32>
    %64 = vector.shape_cast %63 : vector<8x8x128xf32> to vector<64x128xf32>
    %65 = arith.truncf %64 : vector<64x128xf32> to vector<64x128xbf16>
    %c7_56 = arith.constant 7 : index
    %c0_57 = arith.constant 0 : index
    %c0_58 = arith.constant 0 : index
    %66 = vector.load %arg3[%c7_56, %c0_57, %c0_58] : memref<9x128x128xbf16, #tpu.memory_space<vmem>>, vector<1x128x128xbf16>
    %67 = vector.shape_cast %66 : vector<1x128x128xbf16> to vector<128x128xbf16>
    %cst_59 = arith.constant dense<0.000000e+00> : vector<64x128xf32>
    %68 = tpu.matmul %65, %67, %cst_59 {dimension_numbers = #tpu.dot_dimension_numbers<[1], [0], [0], [1], [0, 0, 1, 1], [], []>} : vector<64x128xbf16>, vector<128x128xbf16>, vector<64x128xf32> -> vector<64x128xf32>
    %69 = arith.addf %62, %68 : vector<64x128xf32>
    %c2_60 = arith.constant 2 : index
    %c9_61 = arith.constant 9 : index
    %c0_62 = arith.constant 0 : index
    %70 = vector.load %arg6[%c2_60, %c9_61, %c0_62] : memref<10x24x128xf32, #tpu.memory_space<vmem>>, vector<8x8x128xf32>
    %71 = vector.shape_cast %70 : vector<8x8x128xf32> to vector<64x128xf32>
    %72 = arith.truncf %71 : vector<64x128xf32> to vector<64x128xbf16>
    %c8_63 = arith.constant 8 : index
    %c0_64 = arith.constant 0 : index
    %c0_65 = arith.constant 0 : index
    %73 = vector.load %arg3[%c8_63, %c0_64, %c0_65] : memref<9x128x128xbf16, #tpu.memory_space<vmem>>, vector<1x128x128xbf16>
    %74 = vector.shape_cast %73 : vector<1x128x128xbf16> to vector<128x128xbf16>
    %cst_66 = arith.constant dense<0.000000e+00> : vector<64x128xf32>
    %75 = tpu.matmul %72, %74, %cst_66 {dimension_numbers = #tpu.dot_dimension_numbers<[1], [0], [0], [1], [0, 0, 1, 1], [], []>} : vector<64x128xbf16>, vector<128x128xbf16>, vector<64x128xf32> -> vector<64x128xf32>
    %76 = arith.addf %69, %75 : vector<64x128xf32>
    %c0_67 = arith.constant 0 : index
    %c0_68 = arith.constant 0 : index
    %c0_69 = arith.constant 0 : index
    %77 = vector.load %arg4[%c0_67, %c0_68, %c0_69] : memref<1x64x128xf32, #tpu.memory_space<vmem>>, vector<1x64x128xf32>
    %78 = vector.shape_cast %77 : vector<1x64x128xf32> to vector<64x128xf32>
    %79 = vector.shape_cast %76 : vector<64x128xf32> to vector<1x64x128xf32>
    tpu.vector_store %arg4[%c0_67, %c0_68, %c0_69], %79 {strides = array<i32>} : memref<1x64x128xf32, #tpu.memory_space<vmem>>, vector<1x64x128xf32>,
    %cst_70 = arith.constant dense<0.000000e+00> : vector<128xf32>
    %80 = vector.multi_reduction <add>, %76, %cst_70 [0] : vector<64x128xf32> to vector<128xf32>
    %81 = vector.shape_cast %80 : vector<128xf32> to vector<1x128xf32>
    %82 = arith.mulf %76, %76 : vector<64x128xf32>
    %cst_71 = arith.constant dense<0.000000e+00> : vector<128xf32>
    %83 = vector.multi_reduction <add>, %82, %cst_71 [0] : vector<64x128xf32> to vector<128xf32>
    %84 = vector.shape_cast %83 : vector<128xf32> to vector<1x128xf32>
    %85 = tpu.concatenate %81, %84 in 0 : vector<1x128xf32>, vector<1x128xf32> -> vector<2x128xf32>
    %c0_72 = arith.constant 0 : index
    %c0_73 = arith.constant 0 : index
    %c0_74 = arith.constant 0 : index
    %86 = vector.load %arg5[%c0_72, %c0_73, %c0_74] : memref<1x2x128xf32, #tpu.memory_space<vmem>>, vector<1x2x128xf32>
    %87 = vector.shape_cast %86 : vector<1x2x128xf32> to vector<2x128xf32>
    %88 = vector.shape_cast %85 : vector<2x128xf32> to vector<1x2x128xf32>
    tpu.vector_store %arg5[%c0_72, %c0_73, %c0_74], %88 {strides = array<i32>} : memref<1x2x128xf32, #tpu.memory_space<vmem>>, vector<1x2x128xf32>,
    return
  }
  func.func @transform_0(%arg0: i32) -> (i32, i32) {
    %c0_i32 = arith.constant 0 : i32
    %c0_i32_0 = arith.constant 0 : i32
    return %arg0, %c0_i32 : i32, i32
  }
  func.func @transform_1(%arg0: i32) -> (i32, i32) {
    %c0_i32 = arith.constant 0 : i32
    %c0_i32_0 = arith.constant 0 : i32
    %c0_i32_1 = arith.constant 0 : i32
    return %c0_i32, %c0_i32_0 : i32, i32
  }
  func.func @transform_2(%arg0: i32) -> (i32, i32, i32) {
    %c0_i32 = arith.constant 0 : i32
    %c0_i32_0 = arith.constant 0 : i32
    %c0_i32_1 = arith.constant 0 : i32
    %c0_i32_2 = arith.constant 0 : i32
    return %c0_i32, %c0_i32_0, %c0_i32_1 : i32, i32, i32
  }
  func.func @transform_3(%arg0: i32) -> (i32, i32, i32) {
    %c0_i32 = arith.constant 0 : i32
    %c0_i32_0 = arith.constant 0 : i32
    %c0_i32_1 = arith.constant 0 : i32
    return %arg0, %c0_i32, %c0_i32_0 : i32, i32, i32
  }
  func.func @transform_4(%arg0: i32) -> (i32, i32, i32) {
    %c0_i32 = arith.constant 0 : i32
    %c0_i32_0 = arith.constant 0 : i32
    %c0_i32_1 = arith.constant 0 : i32
    return %arg0, %c0_i32, %c0_i32_0 : i32, i32, i32
  }
}

module attributes {stable_mosaic.version = 11 : i64} {
  func.func @_bn_add_relu_kernel(%arg0: i32, %arg1: memref<64x128xf32, #tpu.memory_space<vmem>>, %arg2: memref<64x128xf32, #tpu.memory_space<vmem>>, %arg3: memref<4x128xf32, #tpu.memory_space<vmem>>, %arg4: memref<64x128xf32, #tpu.memory_space<vmem>>) attributes {dimension_semantics = [#tpu.dimension_semantics<parallel>], iteration_bounds = array<i64: 2>, scalar_prefetch = 0 : i64, scratch_operands = 0 : i64, tpu.core_type = #tpu.core_type<tc>, window_params = [{transform_indices = @transform_0, window_bounds = array<i64: 64, 128>}, {transform_indices = @transform_1, window_bounds = array<i64: 64, 128>}, {pipeline_mode = #tpu.pipeline_mode<synchronous>, transform_indices = @transform_2, window_bounds = array<i64: 4, 128>}, {transform_indices = @transform_3, window_bounds = array<i64: 64, 128>}]} {
    %c0 = arith.constant 0 : index
    %c0_0 = arith.constant 0 : index
    %0 = vector.load %arg3[%c0, %c0_0] : memref<4x128xf32, #tpu.memory_space<vmem>>, vector<4x128xf32>
    %c0_1 = arith.constant 0 : index
    %c0_2 = arith.constant 0 : index
    %1 = vector.load %arg1[%c0_1, %c0_2] : memref<64x128xf32, #tpu.memory_space<vmem>>, vector<64x128xf32>
    %2 = vector.extract_strided_slice %0 {offsets = [0, 0], sizes = [1, 128], strides = [1, 1]} : vector<4x128xf32> to vector<1x128xf32>
    %3 = vector.broadcast %2 : vector<1x128xf32> to vector<64x128xf32>
    %4 = arith.mulf %1, %3 : vector<64x128xf32>
    %5 = vector.extract_strided_slice %0 {offsets = [1, 0], sizes = [1, 128], strides = [1, 1]} : vector<4x128xf32> to vector<1x128xf32>
    %6 = vector.broadcast %5 : vector<1x128xf32> to vector<64x128xf32>
    %7 = arith.addf %4, %6 : vector<64x128xf32>
    %c0_3 = arith.constant 0 : index
    %c0_4 = arith.constant 0 : index
    %8 = vector.load %arg2[%c0_3, %c0_4] : memref<64x128xf32, #tpu.memory_space<vmem>>, vector<64x128xf32>
    %9 = vector.extract_strided_slice %0 {offsets = [2, 0], sizes = [1, 128], strides = [1, 1]} : vector<4x128xf32> to vector<1x128xf32>
    %10 = vector.broadcast %9 : vector<1x128xf32> to vector<64x128xf32>
    %11 = arith.mulf %8, %10 : vector<64x128xf32>
    %12 = arith.addf %7, %11 : vector<64x128xf32>
    %13 = vector.extract_strided_slice %0 {offsets = [3, 0], sizes = [1, 128], strides = [1, 1]} : vector<4x128xf32> to vector<1x128xf32>
    %14 = vector.broadcast %13 : vector<1x128xf32> to vector<64x128xf32>
    %15 = arith.addf %12, %14 : vector<64x128xf32>
    %cst = arith.constant 0.000000e+00 : f32
    %16 = vector.broadcast %cst : f32 to vector<64x128xf32>
    %17 = arith.maximumf %15, %16 : vector<64x128xf32>
    %c0_5 = arith.constant 0 : index
    %c0_6 = arith.constant 0 : index
    %18 = vector.load %arg4[%c0_5, %c0_6] : memref<64x128xf32, #tpu.memory_space<vmem>>, vector<64x128xf32>
    tpu.vector_store %arg4[%c0_5, %c0_6], %17 {strides = array<i32>} : memref<64x128xf32, #tpu.memory_space<vmem>>, vector<64x128xf32>,
    return
  }
  func.func @transform_0(%arg0: i32) -> (i32, i32) {
    %c0_i32 = arith.constant 0 : i32
    %c0_i32_0 = arith.constant 0 : i32
    return %arg0, %c0_i32 : i32, i32
  }
  func.func @transform_1(%arg0: i32) -> (i32, i32) {
    %c1_i32 = arith.constant 1 : i32
    %c0_i32 = arith.constant 0 : i32
    return %arg0, %c1_i32 : i32, i32
  }
  func.func @transform_2(%arg0: i32) -> (i32, i32) {
    %c0_i32 = arith.constant 0 : i32
    %c0_i32_0 = arith.constant 0 : i32
    %c0_i32_1 = arith.constant 0 : i32
    return %c0_i32, %c0_i32_0 : i32, i32
  }
  func.func @transform_3(%arg0: i32) -> (i32, i32) {
    %c0_i32 = arith.constant 0 : i32
    %c0_i32_0 = arith.constant 0 : i32
    return %arg0, %c0_i32 : i32, i32
  }
}

</mosaic_0001>

<llo_original>
// kernel: down_block_forward.3
$region0: #{down_block_forward.3}
  #allocation0 [shape = 'u32[]', space=smem, size = 0x4, offset = 0x4, fixed_abs, tag = 'smem constant byte address 0x4 - core index']
  #allocation1 [shape = 'u32[144,128]{1,0:T(1,128)}', space=vmem, size = 0x12000, scoped, tag = 'internal scratch']
  %s0 = inlined_call_operand.vmem [shape: bf16[128,36], index: 0, kind: input, shape index: {}]
  %s1 = inlined_call_operand.vmem [shape: bf16[36,256], index: 1, kind: input, shape index: {}]
  %s2 = inlined_call_operand.vmem [shape: f32[128,256], index: 2, kind: output, shape index: {0}]
  %s3 = inlined_call_operand.vmem [shape: f32[2,2,256], index: 3, kind: output, shape index: {1}]
  %4 = xla_tuple %s2, %s3
  %s5 = sld [smem:[#allocation0]]
  $region49: #{down_block_forward.3} parent=0
    _
  %s7 = ssub.s32 1, %s5
  %s8 = scalar_select 0, %s7, %s5
  loop: start=0, step=1, limit=4
  $region2: #{down_block_forward.3} parent=0 // loop_pre_header
    _
  $region3: #{down_block_forward.3} parent=0 // loop_header
    %s10 = sphi 0, %s14
    %p11 = scmp.ge.s32.totalorder %s10, 4
    %s20 = sphi 0, %s22
    %s23 = sphi 0, %s20
    %s24 = sphi 0, %s23
    %s40 = sphi 0, %s24
    %s44 = sphi 0, %s44
    %s46 = sphi 0, %s44
    %s47 = sphi 0, %s46
    %s61 = sphi 0, %s47
    %s67 = sphi 0, %s69
    %s70 = sphi 0, %s67
    %s71 = sphi 0, %s70
    %s87 = sphi 0, %s71
    %s93 = sphi 0, %s95
    %s96 = sphi 0, %s93
    %s97 = sphi 0, %s96
    %s113 = sphi 0, %s97
  $region4: #{down_block_forward.3} parent=0 // loop_header_branch
    %13 = sbr.rel (%p11) target = $region8
  $region5: #{down_block_forward.3} parent=0 // loop_body
    %s15 = ssub.s32 %s10, 1
    %s16 = ssub.s32 %s10, 2
    %s17 = sadd.s32 %s10, 1
    %s18 = ssub.s32 %s10, %s17
    %p19 = scmp.eq.s32.totalorder %s18, 0
    %s21 = sadd.s32 %s20, 1
    %s22 = scalar_select %p19, %s20, %s21
    %p25 = pneg %p19
    %p26 = scmp.eq.s32.totalorder %s10, 1
    %p27 = por %p25, %p26
    %p28 = scmp.ne.s32.totalorder %s20, %s23
    %p29 = scmp.eq.s32.totalorder %s10, 0
    %p30 = por %p28, %p29
    %p31 = scmp.ne.s32.totalorder %s20, %s23
    %p32 = scmp.eq.s32.totalorder %s15, 1
    %p33 = por %p31, %p32
    %p34 = scmp.ne.s32.totalorder %s23, %s24
    %p35 = scmp.eq.s32.totalorder %s15, 0
    %p36 = por %p34, %p35
    %p37 = scmp.ne.s32.totalorder %s23, %s24
    %p38 = scmp.eq.s32.totalorder %s16, 1
    %p39 = por %p37, %p38
    %p41 = scmp.ne.s32.totalorder %s24, %s40
    %p42 = scmp.eq.s32.totalorder %s16, 0
    %p43 = por %p41, %p42
    %s45 = sadd.s32 %s44, 1
    %p48 = scmp.eq.s32.totalorder %s10, 1
    %p49 = scmp.ne.s32.totalorder %s44, %s46
    %p50 = scmp.eq.s32.totalorder %s10, 0
    %p51 = por %p49, %p50
    %p52 = scmp.ne.s32.totalorder %s44, %s46
    %p53 = scmp.eq.s32.totalorder %s15, 1
    %p54 = por %p52, %p53
    %p55 = scmp.ne.s32.totalorder %s46, %s47
    %p56 = scmp.eq.s32.totalorder %s15, 0
    %p57 = por %p55, %p56
    %p58 = scmp.ne.s32.totalorder %s46, %s47
    %p59 = scmp.eq.s32.totalorder %s16, 1
    %p60 = por %p58, %p59
    %p62 = scmp.ne.s32.totalorder %s47, %s61
    %p63 = scmp.eq.s32.totalorder %s16, 0
    %p64 = por %p62, %p63
    %s65 = ssub.s32 %s10, %s17
    %p66 = scmp.eq.s32.totalorder %s65, 0
    %s68 = sadd.s32 %s67, 1
    %s69 = scalar_select %p66, %s67, %s68
    %p72 = pneg %p66
    %p73 = scmp.eq.s32.totalorder %s10, 1
    %p74 = por %p72, %p73
    %p75 = scmp.ne.s32.totalorder %s67, %s70
    %p76 = scmp.eq.s32.totalorder %s10, 0
    %p77 = por %p75, %p76
    %p78 = scmp.ne.s32.totalorder %s67, %s70
    %p79 = scmp.eq.s32.totalorder %s15, 1
    %p80 = por %p78, %p79
    %p81 = scmp.ne.s32.totalorder %s70, %s71
    %p82 = scmp.eq.s32.totalorder %s15, 0
    %p83 = por %p81, %p82
    %p84 = scmp.ne.s32.totalorder %s70, %s71
    %p85 = scmp.eq.s32.totalorder %s16, 1
    %p86 = por %p84, %p85
    %p88 = scmp.ne.s32.totalorder %s71, %s87
    %p89 = scmp.eq.s32.totalorder %s16, 0
    %p90 = por %p88, %p89
    %s91 = ssub.s32 %s10, %s17
    %p92 = scmp.eq.s32.totalorder %s91, 0
    %s94 = sadd.s32 %s93, 1
    %s95 = scalar_select %p92, %s93, %s94
    %p98 = pneg %p92
    %p99 = scmp.eq.s32.totalorder %s10, 1
    %p100 = por %p98, %p99
    %p101 = scmp.ne.s32.totalorder %s93, %s96
    %p102 = scmp.eq.s32.totalorder %s10, 0
    %p103 = por %p101, %p102
    %p104 = scmp.ne.s32.totalorder %s93, %s96
    %p105 = scmp.eq.s32.totalorder %s15, 1
    %p106 = por %p104, %p105
    %p107 = scmp.ne.s32.totalorder %s96, %s97
    %p108 = scmp.eq.s32.totalorder %s15, 0
    %p109 = por %p107, %p108
    %p110 = scmp.ne.s32.totalorder %s96, %s97
    %p111 = scmp.eq.s32.totalorder %s16, 1
    %p112 = por %p110, %p111
    %p114 = scmp.ne.s32.totalorder %s97, %s113
    %p115 = scmp.eq.s32.totalorder %s16, 0
    %p116 = por %p114, %p115
    %p117 = scmp.le.s32.totalorder 1, %s10
    %p118 = scmp.lt.s32.totalorder %s10, 3
    %p119 = pnand %p117, %p118
    %p120 = pneg %p119
    // Predicated region
    $region9: #{down_block_forward.3} parent=5 // pred_check
      _
    $region10: #{down_block_forward.3} parent=5 // pred_check_branch
      %122 = sbr.rel (%p119) target = $region12
    $region11: #{down_block_forward.3} parent=5 // pred_region
      %s123 = ssub.s32 %s10, 1
      // Predicated region
      $region13: #{down_block_forward.3} parent=11 // pred_check
        %p124 = pneg %p57
      $region14: #{down_block_forward.3} parent=11 // pred_check_branch
        %126 = sbr.rel (%p124) target = $region16
      $region15: #{down_block_forward.3} parent=11 // pred_region
        _
      $region16: #{down_block_forward.3} parent=11 // pred_fallthru
        _
    $region12: #{down_block_forward.3} parent=5 // pred_fallthru
      _
    %p127 = scmp.lt.s32.totalorder %s10, 2
    // Predicated region
    $region17: #{down_block_forward.3} parent=5 // pred_check
      %p128 = pneg %p127
    $region18: #{down_block_forward.3} parent=5 // pred_check_branch
      %130 = sbr.rel (%p128) target = $region20
    $region19: #{down_block_forward.3} parent=5 // pred_region
      // Predicated region
      $region21: #{down_block_forward.3} parent=19 // pred_check
        %p131 = pneg %p30
      $region22: #{down_block_forward.3} parent=19 // pred_check_branch
        %133 = sbr.rel (%p131) target = $region24
      $region23: #{down_block_forward.3} parent=19 // pred_region
        %s134 = smul.u32 8, %s10
        %p135 = scmp.lt.s32.totalorder %s134, 15
        %s136 = scalar_select %p135, %s134, 15
        %s137 = smul.addr %s136, 4
        %s138 = scalar_lea.vmem %s0, %s137
        %s139 = smul.u32 8, %s10
      $region24: #{down_block_forward.3} parent=19 // pred_fallthru
        _
    $region20: #{down_block_forward.3} parent=5 // pred_fallthru
      _
    %p140 = scmp.le.s32.totalorder 1, %s10
    %p141 = scmp.lt.s32.totalorder %s10, 3
    %p142 = pnand %p140, %p141
    %p143 = pneg %p142
    // Predicated region
    $region25: #{down_block_forward.3} parent=5 // pred_check
      _
    $region26: #{down_block_forward.3} parent=5 // pred_check_branch
      %145 = sbr.rel (%p142) target = $region28
    $region27: #{down_block_forward.3} parent=5 // pred_region
      %s146 = ssub.s32 %s10, 1
      %s147 = smul.u32 8, %s15
      %p148 = scmp.lt.s32.totalorder %s147, 15
      %s149 = scalar_select %p148, %s147, 15
      %s150 = smul.addr %s149, 4
      %s151 = scalar_lea.vmem %s0, %s150
      %p152 = pneg %p36
      %p153 = pneg %p33
      %p154 = pneg %p57
      %p155 = pneg %p54
      %p156 = pneg %p83
      %p157 = pneg %p80
      %s158 = smul.u32 8, %s15
      %p159 = scmp.lt.s32.totalorder %s158, 15
      %s160 = scalar_select %p159, %s158, 15
      %s161 = smul.addr %s160, 2
      %s162 = smul.addr %s161, 8
      %s163 = scalar_lea.vmem %s2, %s162
      %p164 = pneg %p109
      %p165 = pneg %p106
      %p166 = scmp.lt.s32.totalorder %s15, 1
      %s167 = scalar_select %p166, %s15, 1
      %s168 = smul.addr %s167, 2
      %s169 = smul.addr %s168, 2
      %s170 = scalar_lea.vmem %s3, %s169
      %s171 = smul.u32 8, %s15
      %p172 = scmp.lt.s32.totalorder %s171, 15
      %s173 = scalar_select %p172, %s171, 15
      %s174 = smul.addr %s173, 4
      %s175 = scalar_lea.vmem %s0, %s174
      %s176 = smul.u32 8, %s15
      %s177 = smul.u32 8, %s15
      %p178 = scmp.lt.s32.totalorder %s177, 15
      %s179 = scalar_select %p178, %s177, 15
      %s180 = smul.addr %s179, 2
      %s181 = smul.addr %s180, 8
      %s182 = scalar_lea.vmem %s2, %s181
      %s183 = smul.u32 8, %s15
      %p184 = scmp.lt.s32.totalorder %s15, 1
      %s185 = scalar_select %p184, %s15, 1
      %s186 = smul.addr %s185, 2
      %s187 = smul.addr %s186, 2
      %s188 = scalar_lea.vmem %s3, %s187
      %v190 = vld [vmem:[%s175] sm:$0xf]
      %v191 = vld [vmem:[%s175 + $0x4] sm:$0xf]
      %v192 = vld [vmem:[%s175 + $0x8] sm:$0xf]
      %v193 = vld [vmem:[%s175 + $0xc] sm:$0xf]
      %v194 = vld [vmem:[%s175 + $0x10] sm:$0xf]
      %v195 = vld [vmem:[%s175 + $0x14] sm:$0xf]
      %v196 = vld [vmem:[%s175 + $0x18] sm:$0xf]
      %v197 = vld [vmem:[%s175 + $0x1c] sm:$0xf]
      %v198 = vld [vmem:[%s1] sm:$0xff]
      %v199 = vld [vmem:[%s1 + $0x8] sm:$0xff]
      %v200 = vld [vmem:[%s1 + $0x10] sm:$0xff]
      %v201 = vld [vmem:[%s1 + $0x18] sm:$0xff]
      %v202 = vld [vmem:[%s1 + $0x20] sm:$0x33]
      %v211 = vunpack.c.l.b16 %v190
      %v212 = vunpack.c.l.b16 %v191
      %v213 = vunpack.c.l.b16 %v192
      %v214 = vunpack.c.l.b16 %v193
      %v215 = vunpack.c.l.b16 %v194
      %v216 = vunpack.c.l.b16 %v195
      %v217 = vunpack.c.l.b16 %v196
      %v218 = vunpack.c.l.b16 %v197
      %v219 = vpack.c.b16 %v212, %v211
      %v220 = vpack.c.b16 %v214, %v213
      %v221 = vpack.c.b16 %v216, %v215
      %v222 = vpack.c.b16 %v218, %v217
      %v228 = vunpack.c.l.b16 %v198
      %v229 = vunpack.c.h.b16 %v198
      %v230 = vunpack.c.l.b16 %v199
      %v231 = vunpack.c.h.b16 %v199
      %v232 = vunpack.c.l.b16 %v200
      %v233 = vunpack.c.h.b16 %v200
      %v234 = vunpack.c.l.b16 %v201
      %v235 = vunpack.c.h.b16 %v201
      %v236 = vunpack.c.l.b16 %v202
      %v237 = vunpack.c.h.b16 %v202
      %v238 = vpack.c.b16 %v230, %v228
      %v239 = vpack.c.b16 %v231, %v229
      %v240 = vpack.c.b16 %v234, %v232
      %v241 = vpack.c.b16 %v235, %v233
      %v242 = vpack.c.b16 %v236, %v236
      %v243 = vpack.c.b16 %v237, %v237
      %vm248 = vcmask 293888
      %v250 = vsel %vm248, %v219, 0
      %v253 = vsel %vm248, %v220, 0
      %v256 = vsel %vm248, %v221, 0
      %v259 = vsel %vm248, %v222, 0
      %vm261 = vcmask 1041408
      %v263 = vsel %vm261, %v242, 0
      %v266 = vsel %vm261, %v243, 0
      %268 = vmatprep.subr.bf16.mxu0 %v239
      %269 = vmatpush1.bf16.msra.mxu0 %v238
      %270 = vmatprep.subr.bf16.mxu0 %v241
      %271 = vmatpush1.bf16.msra.mxu0 %v240
      %272 = vmatprep.subr.bf16.mxu0 %v266
      %273 = vmatpush1.bf16.msra.mxu0 %v263
      %274 = vmatprep.subr.bf16.mxu0 0
      %275 = vmatpush1.bf16.msra.mxu0 0
      %276 = vmatprep.subr.bf16.mxu0 0
      %277 = vmatpush1.bf16.msra.mxu0 0
      %278 = vmatprep.subr.bf16.mxu0 0
      %279 = vmatpush1.bf16.msra.mxu0 0
      %280 = vmatprep.subr.bf16.mxu0 0
      %281 = vmatpush1.bf16.msra.mxu0 0
      %282 = vmatprep.subr.bf16.mxu0 0
      %283 = vmatpush1.bf16.msra.mxu0 0
      %284 = vmatprep.subr.bf16.mxu0 0
      %285 = vmatpush1.bf16.msra.mxu0 0
      %286 = vmatprep.subr.bf16.mxu0 0
      %287 = vmatpush1.bf16.msra.mxu0 0
      %288 = vmatprep.subr.bf16.mxu0 0
      %289 = vmatpush1.bf16.msra.mxu0 0
      %290 = vmatprep.subr.bf16.mxu0 0
      %291 = vmatpush1.bf16.msra.mxu0 0
      %292 = vmatprep.subr.bf16.mxu0 0
      %293 = vmatpush1.bf16.msra.mxu0 0
      %294 = vmatprep.subr.bf16.mxu0 0
      %295 = vmatpush1.bf16.msra.mxu0 0
      %296 = vmatprep.subr.bf16.mxu0 0
      %297 = vmatpush1.bf16.msra.mxu0 0
      %298 = vmatprep.subr.bf16.mxu0 0
      %299 = vmatpush1.bf16.msra.mxu0 0
      %300 = vmatprep.mubr.bf16.mxu0 0
      %301 = vmatmul.mubr.bf16.gmra.mrb[0].mxu0 %v250
      %v302 = vpop.f32.mrb[0].mxu0
      %v303 = vadd.f32 0.0, %v302
      %v304 = vpop.f32.mrb[0].mxu0
      %v305 = vadd.f32 0.0, %v304
      %v306 = vpop.f32.mrb[0].mxu0
      %v307 = vadd.f32 0.0, %v306
      %v308 = vpop.f32.mrb[0].mxu0
      %v309 = vadd.f32 0.0, %v308
      %310 = vmatprep.mubr.bf16.mxu0 0
      %311 = vmatmul.mubr.bf16.gmra.mrb[0].mxu0 %v253
      %v312 = vpop.f32.mrb[0].mxu0
      %v313 = vadd.f32 0.0, %v312
      %v314 = vpop.f32.mrb[0].mxu0
      %v315 = vadd.f32 0.0, %v314
      %v316 = vpop.f32.mrb[0].mxu0
      %v317 = vadd.f32 0.0, %v316
      %v318 = vpop.f32.mrb[0].mxu0
      %v319 = vadd.f32 0.0, %v318
      %320 = vmatprep.mubr.bf16.mxu0 0
      %321 = vmatmul.mubr.bf16.gmra.mrb[0].mxu0 %v256
      %v322 = vpop.f32.mrb[0].mxu0
      %v323 = vadd.f32 0.0, %v322
      %v324 = vpop.f32.mrb[0].mxu0
      %v325 = vadd.f32 0.0, %v324
      %v326 = vpop.f32.mrb[0].mxu0
      %v327 = vadd.f32 0.0, %v326
      %v328 = vpop.f32.mrb[0].mxu0
      %v329 = vadd.f32 0.0, %v328
      %330 = vmatprep.mubr.bf16.mxu0 0
      %331 = vmatmul.mubr.bf16.gmra.mrb[0].mxu0 %v259
      %v332 = vpop.f32.mrb[0].mxu0
      %v333 = vadd.f32 0.0, %v332
      %v334 = vpop.f32.mrb[0].mxu0
      %v335 = vadd.f32 0.0, %v334
      %v336 = vpop.f32.mrb[0].mxu0
      %v337 = vadd.f32 0.0, %v336
      %v338 = vpop.f32.mrb[0].mxu0
      %v339 = vadd.f32 0.0, %v338
      %340 = vdwg.mxu0
      %341 = vst [vmem:[%s182] sm:$0xff] %v303
      %342 = vst [vmem:[%s182 + $0x8] sm:$0xff] %v305
      %343 = vst [vmem:[%s182 + $0x10] sm:$0xff] %v307
      %344 = vst [vmem:[%s182 + $0x18] sm:$0xff] %v309
      %345 = vst [vmem:[%s182 + $0x20] sm:$0xff] %v313
      %346 = vst [vmem:[%s182 + $0x28] sm:$0xff] %v315
      %347 = vst [vmem:[%s182 + $0x30] sm:$0xff] %v317
      %348 = vst [vmem:[%s182 + $0x38] sm:$0xff] %v319
      %349 = vst [vmem:[%s182 + $0x40] sm:$0xff] %v323
      %350 = vst [vmem:[%s182 + $0x48] sm:$0xff] %v325
      %351 = vst [vmem:[%s182 + $0x50] sm:$0xff] %v327
      %352 = vst [vmem:[%s182 + $0x58] sm:$0xff] %v329
      %353 = vst [vmem:[%s182 + $0x60] sm:$0xff] %v333
      %354 = vst [vmem:[%s182 + $0x68] sm:$0xff] %v335
      %355 = vst [vmem:[%s182 + $0x70] sm:$0xff] %v337
      %356 = vst [vmem:[%s182 + $0x78] sm:$0xff] %v339
      %v357 = vadd.f32 %v303, %v307
      %v358 = vadd.f32 %v357, %v313
      %v359 = vadd.f32 %v358, %v317
      %v360 = vadd.f32 %v359, %v323
      %v361 = vadd.f32 %v360, %v327
      %v362 = vadd.f32 %v361, %v333
      %v363 = vadd.f32 %v362, %v337
      %v364 = vrot.slane %v363, 4
      %v365 = vadd.f32 %v363, %v364
      %v366 = vrot.slane %v365, 2
      %v367 = vadd.f32 %v365, %v366
      %v368 = vrot.slane %v367, 1
      %v369 = vadd.f32 %v367, %v368
      %v370 = vadd.f32 %v305, %v309
      %v371 = vadd.f32 %v370, %v315
      %v372 = vadd.f32 %v371, %v319
      %v373 = vadd.f32 %v372, %v325
      %v374 = vadd.f32 %v373, %v329
      %v375 = vadd.f32 %v374, %v335
      %v376 = vadd.f32 %v375, %v339
      %v377 = vrot.slane %v376, 4
      %v378 = vadd.f32 %v376, %v377
      %v379 = vrot.slane %v378, 2
      %v380 = vadd.f32 %v378, %v379
      %v381 = vrot.slane %v380, 1
      %v382 = vadd.f32 %v380, %v381
      %v383 = vmul.f32 %v303, %v303
      %v384 = vmul.f32 %v305, %v305
      %v385 = vmul.f32 %v307, %v307
      %v386 = vmul.f32 %v309, %v309
      %v387 = vmul.f32 %v313, %v313
      %v388 = vmul.f32 %v315, %v315
      %v389 = vmul.f32 %v317, %v317
      %v390 = vmul.f32 %v319, %v319
      %v391 = vmul.f32 %v323, %v323
      %v392 = vmul.f32 %v325, %v325
      %v393 = vmul.f32 %v327, %v327
      %v394 = vmul.f32 %v329, %v329
      %v395 = vmul.f32 %v333, %v333
      %v396 = vmul.f32 %v335, %v335
      %v397 = vmul.f32 %v337, %v337
      %v398 = vmul.f32 %v339, %v339
      %v399 = vadd.f32 %v383, %v385
      %v400 = vadd.f32 %v399, %v387
      %v401 = vadd.f32 %v400, %v389
      %v402 = vadd.f32 %v401, %v391
      %v403 = vadd.f32 %v402, %v393
      %v404 = vadd.f32 %v403, %v395
      %v405 = vadd.f32 %v404, %v397
      %v406 = vrot.slane %v405, 4
      %v407 = vadd.f32 %v405, %v406
      %v408 = vrot.slane %v407, 2
      %v409 = vadd.f32 %v407, %v408
      %v410 = vrot.slane %v409, 1
      %v411 = vadd.f32 %v409, %v410
      %v412 = vadd.f32 %v384, %v386
      %v413 = vadd.f32 %v412, %v388
      %v414 = vadd.f32 %v413, %v390
      %v415 = vadd.f32 %v414, %v392
      %v416 = vadd.f32 %v415, %v394
      %v417 = vadd.f32 %v416, %v396
      %v418 = vadd.f32 %v417, %v398
      %v419 = vrot.slane %v418, 4
      %v420 = vadd.f32 %v418, %v419
      %v421 = vrot.slane %v420, 2
      %v422 = vadd.f32 %v420, %v421
      %v423 = vrot.slane %v422, 1
      %v424 = vadd.f32 %v422, %v423
      %vm425 = vcmask 1040384
      %v426 = vsel %vm425, %v369, %v411
      %v427 = vsel %vm425, %v382, %v424
      %v430 = vcombine.low %v426, %v427
      %v432 = vunpack.c.l.s4 1983009808
      %v433 = vunpack.c.0.s8 %v432
      %v434 = vlaneseq
      %v435 = vshrl.u32 %v434, 7
      %v436 = vsub.s32 %v433, %v435
      %v437 = vrot.slane %v430, %v436
      %439 = vst [vmem:[%s188] sm:$0xf] %v437
      %s440 = smul.u32 8, %s15
      %p441 = scmp.lt.s32.totalorder %s440, 15
      %s442 = scalar_select %p441, %s440, 15
      %s443 = smul.addr %s442, 2
      %s444 = smul.addr %s443, 8
      %s445 = scalar_lea.vmem %s2, %s444
      %p446 = scmp.lt.s32.totalorder %s15, 1
      %s447 = scalar_select %p446, %s15, 1
      %s448 = smul.addr %s447, 2
      %s449 = smul.addr %s448, 2
      %s450 = scalar_lea.vmem %s3, %s449
      // Predicated region
      $region29: #{down_block_forward.3} parent=27 // pred_check
        %p451 = pneg %p80
      $region30: #{down_block_forward.3} parent=27 // pred_check_branch
        %453 = sbr.rel (%p451) target = $region32
      $region31: #{down_block_forward.3} parent=27 // pred_region
        %s454 = smul.u32 8, %s15
      $region32: #{down_block_forward.3} parent=27 // pred_fallthru
        _
      // Predicated region
      $region33: #{down_block_forward.3} parent=27 // pred_check
        %p455 = pneg %p106
      $region34: #{down_block_forward.3} parent=27 // pred_check_branch
        %457 = sbr.rel (%p455) target = $region36
      $region35: #{down_block_forward.3} parent=27 // pred_region
        _
      $region36: #{down_block_forward.3} parent=27 // pred_fallthru
        _
    $region28: #{down_block_forward.3} parent=5 // pred_fallthru
      _
    %p458 = scmp.le.s32.totalorder 2, %s10
    // Predicated region
    $region37: #{down_block_forward.3} parent=5 // pred_check
      %p459 = pneg %p458
    $region38: #{down_block_forward.3} parent=5 // pred_check_branch
      %461 = sbr.rel (%p459) target = $region40
    $region39: #{down_block_forward.3} parent=5 // pred_region
      %s462 = ssub.s32 %s10, 2
      // Predicated region
      $region41: #{down_block_forward.3} parent=39 // pred_check
        %p463 = pneg %p86
      $region42: #{down_block_forward.3} parent=39 // pred_check_branch
        %465 = sbr.rel (%p463) target = $region44
      $region43: #{down_block_forward.3} parent=39 // pred_region
        %s466 = smul.u32 8, %s16
        %p467 = scmp.lt.s32.totalorder %s466, 15
        %s468 = scalar_select %p467, %s466, 15
        %s469 = smul.addr %s468, 2
        %s470 = smul.addr %s469, 8
        %s471 = scalar_lea.vmem %s2, %s470
      $region44: #{down_block_forward.3} parent=39 // pred_fallthru
        _
      // Predicated region
      $region45: #{down_block_forward.3} parent=39 // pred_check
        %p472 = pneg %p112
      $region46: #{down_block_forward.3} parent=39 // pred_check_branch
        %474 = sbr.rel (%p472) target = $region48
      $region47: #{down_block_forward.3} parent=39 // pred_region
        %p475 = scmp.lt.s32.totalorder %s16, 1
        %s476 = scalar_select %p475, %s16, 1
        %s477 = smul.addr %s476, 2
        %s478 = smul.addr %s477, 2
        %s479 = scalar_lea.vmem %s3, %s478
      $region48: #{down_block_forward.3} parent=39 // pred_fallthru
        _
    $region40: #{down_block_forward.3} parent=5 // pred_fallthru
      _
  $region6: #{down_block_forward.3} parent=0 // loop_footer
    %s14 = sadd.s32 1, %s10
  $region7: #{down_block_forward.3} parent=0 // loop_footer_branch
    %9 = sbr.rel target = $region3
  $region8: #{down_block_forward.3} parent=0 // loop_exit
    _

// kernel: down_block_forward.5
$region0: #{down_block_forward.5}
  #allocation0 [shape = 'u32[]', space=smem, size = 0x4, offset = 0x4, fixed_abs, tag = 'smem constant byte address 0x4 - core index']
  #allocation1 [shape = 'u32[144,128]{1,0:T(1,128)}', space=vmem, size = 0x12000, scoped, tag = 'internal scratch']
  %s0 = inlined_call_operand.vmem [shape: f32[128,128], index: 0, kind: input, shape index: {}]
  %s1 = inlined_call_operand.vmem [shape: f32[128,256], index: 1, kind: input, shape index: {}]
  %s2 = inlined_call_operand.vmem [shape: f32[4,128], index: 2, kind: input, shape index: {}]
  %s3 = inlined_call_operand.vmem [shape: f32[128,128], index: 3, kind: output, shape index: {}]
  %s4 = sld [smem:[#allocation0]]
  $region83: #{down_block_forward.5} parent=0
    _
  %s6 = ssub.s32 1, %s4
  %s7 = scalar_select 0, %s6, %s4
  $region1: #{down_block_forward.5} parent=0
    #allocation2 [shape = 'u8[65536]{0}', space=vmem, size = 0x10000, scoped, tag = 'input window, operand 1']
    loop: start=0, step=1, limit=4
    $region2: #{down_block_forward.5} parent=1 // loop_pre_header
      _
    $region3: #{down_block_forward.5} parent=1 // loop_header
      %s9 = sphi 0, %s13
      %p10 = scmp.ge.s32.totalorder %s9, 4
      %s19 = sphi 0, %s21
      %s22 = sphi 0, %s19
      %s23 = sphi 0, %s22
      %s39 = sphi 0, %s23
      %s45 = sphi 0, %s47
      %s48 = sphi 0, %s45
      %s49 = sphi 0, %s48
      %s65 = sphi 0, %s49
      %s69 = sphi 0, %s69
      %s71 = sphi 0, %s69
      %s72 = sphi 0, %s71
      %s86 = sphi 0, %s72
      %s92 = sphi 0, %s94
      %s95 = sphi 0, %s92
      %s96 = sphi 0, %s95
      %s112 = sphi 0, %s96
    $region4: #{down_block_forward.5} parent=1 // loop_header_branch
      %12 = sbr.rel (%p10) target = $region8
    $region5: #{down_block_forward.5} parent=1 // loop_body
      %s14 = ssub.s32 %s9, 1
      %s15 = ssub.s32 %s9, 2
      %s16 = sadd.s32 %s9, 1
      %s17 = ssub.s32 %s9, %s16
      %p18 = scmp.eq.s32.totalorder %s17, 0
      %s20 = sadd.s32 %s19, 1
      %s21 = scalar_select %p18, %s19, %s20
      %p24 = pneg %p18
      %p25 = scmp.eq.s32.totalorder %s9, 1
      %p26 = por %p24, %p25
      %p27 = scmp.ne.s32.totalorder %s19, %s22
      %p28 = scmp.eq.s32.totalorder %s9, 0
      %p29 = por %p27, %p28
      %p30 = scmp.ne.s32.totalorder %s19, %s22
      %p31 = scmp.eq.s32.totalorder %s14, 1
      %p32 = por %p30, %p31
      %p33 = scmp.ne.s32.totalorder %s22, %s23
      %p34 = scmp.eq.s32.totalorder %s14, 0
      %p35 = por %p33, %p34
      %p36 = scmp.ne.s32.totalorder %s22, %s23
      %p37 = scmp.eq.s32.totalorder %s15, 1
      %p38 = por %p36, %p37
      %p40 = scmp.ne.s32.totalorder %s23, %s39
      %p41 = scmp.eq.s32.totalorder %s15, 0
      %p42 = por %p40, %p41
      %s43 = ssub.s32 %s9, %s16
      %p44 = scmp.eq.s32.totalorder %s43, 0
      %s46 = sadd.s32 %s45, 1
      %s47 = scalar_select %p44, %s45, %s46
      %p50 = pneg %p44
      %p51 = scmp.eq.s32.totalorder %s9, 1
      %p52 = por %p50, %p51
      %p53 = scmp.ne.s32.totalorder %s45, %s48
      %p54 = scmp.eq.s32.totalorder %s9, 0
      %p55 = por %p53, %p54
      %p56 = scmp.ne.s32.totalorder %s45, %s48
      %p57 = scmp.eq.s32.totalorder %s14, 1
      %p58 = por %p56, %p57
      %p59 = scmp.ne.s32.totalorder %s48, %s49
      %p60 = scmp.eq.s32.totalorder %s14, 0
      %p61 = por %p59, %p60
      %p62 = scmp.ne.s32.totalorder %s48, %s49
      %p63 = scmp.eq.s32.totalorder %s15, 1
      %p64 = por %p62, %p63
      %p66 = scmp.ne.s32.totalorder %s49, %s65
      %p67 = scmp.eq.s32.totalorder %s15, 0
      %p68 = por %p66, %p67
      %s70 = sadd.s32 %s69, 1
      %p73 = scmp.eq.s32.totalorder %s9, 1
      %p74 = scmp.ne.s32.totalorder %s69, %s71
      %p75 = scmp.eq.s32.totalorder %s9, 0
      %p76 = por %p74, %p75
      %p77 = scmp.ne.s32.totalorder %s69, %s71
      %p78 = scmp.eq.s32.totalorder %s14, 1
      %p79 = por %p77, %p78
      %p80 = scmp.ne.s32.totalorder %s71, %s72
      %p81 = scmp.eq.s32.totalorder %s14, 0
      %p82 = por %p80, %p81
      %p83 = scmp.ne.s32.totalorder %s71, %s72
      %p84 = scmp.eq.s32.totalorder %s15, 1
      %p85 = por %p83, %p84
      %p87 = scmp.ne.s32.totalorder %s72, %s86
      %p88 = scmp.eq.s32.totalorder %s15, 0
      %p89 = por %p87, %p88
      %s90 = ssub.s32 %s9, %s16
      %p91 = scmp.eq.s32.totalorder %s90, 0
      %s93 = sadd.s32 %s92, 1
      %s94 = scalar_select %p91, %s92, %s93
      %p97 = pneg %p91
      %p98 = scmp.eq.s32.totalorder %s9, 1
      %p99 = por %p97, %p98
      %p100 = scmp.ne.s32.totalorder %s92, %s95
      %p101 = scmp.eq.s32.totalorder %s9, 0
      %p102 = por %p100, %p101
      %p103 = scmp.ne.s32.totalorder %s92, %s95
      %p104 = scmp.eq.s32.totalorder %s14, 1
      %p105 = por %p103, %p104
      %p106 = scmp.ne.s32.totalorder %s95, %s96
      %p107 = scmp.eq.s32.totalorder %s14, 0
      %p108 = por %p106, %p107
      %p109 = scmp.ne.s32.totalorder %s95, %s96
      %p110 = scmp.eq.s32.totalorder %s15, 1
      %p111 = por %p109, %p110
      %p113 = scmp.ne.s32.totalorder %s96, %s112
      %p114 = scmp.eq.s32.totalorder %s15, 0
      %p115 = por %p113, %p114
      %p116 = scmp.le.s32.totalorder 1, %s9
      %p117 = scmp.lt.s32.totalorder %s9, 3
      %p118 = pnand %p116, %p117
      %p119 = pneg %p118
      // Predicated region
      $region9: #{down_block_forward.5} parent=5 // pred_check
        _
      $region10: #{down_block_forward.5} parent=5 // pred_check_branch
        %121 = sbr.rel (%p118) target = $region12
      $region11: #{down_block_forward.5} parent=5 // pred_region
        %s122 = ssub.s32 %s9, 1
        // Predicated region
        $region13: #{down_block_forward.5} parent=11 // pred_check
          %p123 = pneg %p82
        $region14: #{down_block_forward.5} parent=11 // pred_check_branch
          %125 = sbr.rel (%p123) target = $region16
        $region15: #{down_block_forward.5} parent=11 // pred_region
          _
        $region16: #{down_block_forward.5} parent=11 // pred_fallthru
          _
      $region12: #{down_block_forward.5} parent=5 // pred_fallthru
        _
      %p126 = scmp.lt.s32.totalorder %s9, 2
      // Predicated region
      $region17: #{down_block_forward.5} parent=5 // pred_check
        %p127 = pneg %p126
      $region18: #{down_block_forward.5} parent=5 // pred_check_branch
        %129 = sbr.rel (%p127) target = $region20
      $region19: #{down_block_forward.5} parent=5 // pred_region
        // Predicated region
        $region21: #{down_block_forward.5} parent=19 // pred_check
          %p130 = pneg %p29
        $region22: #{down_block_forward.5} parent=19 // pred_check_branch
          %132 = sbr.rel (%p130) target = $region24
        $region23: #{down_block_forward.5} parent=19 // pred_region
          %s133 = smul.u32 8, %s9
          %p134 = scmp.lt.s32.totalorder %s133, 15
          %s135 = scalar_select %p134, %s133, 15
          %s136 = smul.addr %s135, 8
          %s137 = scalar_lea.vmem %s0, %s136
          %s138 = smul.u32 8, %s9
        $region24: #{down_block_forward.5} parent=19 // pred_fallthru
          _
        // Predicated region
        $region25: #{down_block_forward.5} parent=19 // pred_check
          %p139 = pneg %p55
        $region26: #{down_block_forward.5} parent=19 // pred_check_branch
          %141 = sbr.rel (%p139) target = $region28
        $region27: #{down_block_forward.5} parent=19 // pred_region
          %s142 = sand.u32 %s45, 1
          %s143 = sand.u32 %s45, 1
          %s144 = smul.addr %s143, 64
          %s145 = scalar_lea.vmem [#allocation2], %s144
          %s146 = smul.u32 8, %s9
          %s147 = smul.addr %s146, 2
          %s148 = sadd.s32 1, %s147
          %s149 = smul.addr %s148, 8
          %s150 = scalar_lea.vmem %s1, %s149
          // Predicated region
          $region29: #{down_block_forward.5} parent=27 // pred_check
            _
          $region30: #{down_block_forward.5} parent=27 // pred_check_branch
            %152 = sbr.rel (0) target = $region32
          $region31: #{down_block_forward.5} parent=27 // pred_region
            // Predicated region
            $region33: #{down_block_forward.5} parent=31 // pred_check
              _
            $region34: #{down_block_forward.5} parent=31 // pred_check_branch
              %154 = sbr.rel (0) target = $region36
            $region35: #{down_block_forward.5} parent=31 // pred_region
              // Predicated region
              $region48: #{down_block_forward.5} parent=35 // pred_check
                _
              $region49: #{down_block_forward.5} parent=35 // pred_check_branch
                %183 = sbr.rel (0) target = $region51
              $region50: #{down_block_forward.5} parent=35 // pred_region
                loop: start=0, step=1, limit=1
                $region52: #{down_block_forward.5} parent=50 // loop_pre_header
                  _
                $region53: #{down_block_forward.5} parent=50 // loop_header
                  %s185 = sphi 0, %s189
                  %p186 = scmp.ge.s32.totalorder %s185, 1
                  %s190 = sphi %s150, %s150
                  %s191 = sphi %s145, %s145
                $region54: #{down_block_forward.5} parent=50 // loop_header_branch
                  %188 = sbr.rel (%p186) target = $region58
                $region55: #{down_block_forward.5} parent=50 // loop_body
                  %v192 = vld [vmem:[%s190] sm:$0xff]
                  %193 = vst [vmem:[%s191] sm:$0xff] %v192
                  %v194 = vld [vmem:[%s190 + $0x10] sm:$0xff]
                  %195 = vst [vmem:[%s191 + $0x8] sm:$0xff] %v194
                  %v196 = vld [vmem:[%s190 + $0x20] sm:$0xff]
                  %197 = vst [vmem:[%s191 + $0x10] sm:$0xff] %v196
                  %v198 = vld [vmem:[%s190 + $0x30] sm:$0xff]
                  %199 = vst [vmem:[%s191 + $0x18] sm:$0xff] %v198
                  %v200 = vld [vmem:[%s190 + $0x40] sm:$0xff]
                  %201 = vst [vmem:[%s191 + $0x20] sm:$0xff] %v200
                  %v202 = vld [vmem:[%s190 + $0x50] sm:$0xff]
                  %203 = vst [vmem:[%s191 + $0x28] sm:$0xff] %v202
                  %v204 = vld [vmem:[%s190 + $0x60] sm:$0xff]
                  %205 = vst [vmem:[%s191 + $0x30] sm:$0xff] %v204
                  %v206 = vld [vmem:[%s190 + $0x70] sm:$0xff]
                  %207 = vst [vmem:[%s191 + $0x38] sm:$0xff] %v206
                $region56: #{down_block_forward.5} parent=50 // loop_footer
                  %s189 = sadd.s32 1, %s185
                $region57: #{down_block_forward.5} parent=50 // loop_footer_branch
                  %184 = sbr.rel target = $region53
                $region58: #{down_block_forward.5} parent=50 // loop_exit
                  _
              $region51: #{down_block_forward.5} parent=35 // pred_fallthru
                _
              // Predicated region
              $region59: #{down_block_forward.5} parent=35 // pred_check
                _
              $region60: #{down_block_forward.5} parent=35 // pred_check_branch
                %209 = sbr.rel target = $region62
              $region61: #{down_block_forward.5} parent=35 // pred_region
                _
              $region62: #{down_block_forward.5} parent=35 // pred_fallthru
                _
            $region36: #{down_block_forward.5} parent=31 // pred_fallthru
              _
            // Predicated region
            $region37: #{down_block_forward.5} parent=31 // pred_check
              _
            $region38: #{down_block_forward.5} parent=31 // pred_check_branch
              %156 = sbr.rel target = $region40
            $region39: #{down_block_forward.5} parent=31 // pred_region
              loop: start=0, step=1, limit=1
              $region41: #{down_block_forward.5} parent=39 // loop_pre_header
                _
              $region42: #{down_block_forward.5} parent=39 // loop_header
                %s159 = sphi 0, %s163
                %p160 = scmp.ge.s32.totalorder %s159, 1
                %s164 = sphi %s150, %s150
                %s165 = sphi %s145, %s145
              $region43: #{down_block_forward.5} parent=39 // loop_header_branch
                %162 = sbr.rel (%p160) target = $region47
              $region44: #{down_block_forward.5} parent=39 // loop_body
                %v166 = vld [vmem:[%s164] sm:$0xff]
                %167 = vst [vmem:[%s165] sm:$0xff] %v166
                %v168 = vld [vmem:[%s164 + $0x10] sm:$0xff]
                %169 = vst [vmem:[%s165 + $0x8] sm:$0xff] %v168
                %v170 = vld [vmem:[%s164 + $0x20] sm:$0xff]
                %171 = vst [vmem:[%s165 + $0x10] sm:$0xff] %v170
                %v172 = vld [vmem:[%s164 + $0x30] sm:$0xff]
                %173 = vst [vmem:[%s165 + $0x18] sm:$0xff] %v172
                %v174 = vld [vmem:[%s164 + $0x40] sm:$0xff]
                %175 = vst [vmem:[%s165 + $0x20] sm:$0xff] %v174
                %v176 = vld [vmem:[%s164 + $0x50] sm:$0xff]
                %177 = vst [vmem:[%s165 + $0x28] sm:$0xff] %v176
                %v178 = vld [vmem:[%s164 + $0x60] sm:$0xff]
                %179 = vst [vmem:[%s165 + $0x30] sm:$0xff] %v178
                %v180 = vld [vmem:[%s164 + $0x70] sm:$0xff]
                %181 = vst [vmem:[%s165 + $0x38] sm:$0xff] %v180
              $region45: #{down_block_forward.5} parent=39 // loop_footer
                %s163 = sadd.s32 1, %s159
              $region46: #{down_block_forward.5} parent=39 // loop_footer_branch
                %158 = sbr.rel target = $region42
              $region47: #{down_block_forward.5} parent=39 // loop_exit
                _
            $region40: #{down_block_forward.5} parent=31 // pred_fallthru
              _
          $region32: #{down_block_forward.5} parent=27 // pred_fallthru
            _
          %210 = vnop
        $region28: #{down_block_forward.5} parent=19 // pred_fallthru
          _
      $region20: #{down_block_forward.5} parent=5 // pred_fallthru
        _
      %p211 = scmp.le.s32.totalorder 1, %s9
      %p212 = scmp.lt.s32.totalorder %s9, 3
      %p213 = pnand %p211, %p212
      %p214 = pneg %p213
      // Predicated region
      $region63: #{down_block_forward.5} parent=5 // pred_check
        _
      $region64: #{down_block_forward.5} parent=5 // pred_check_branch
        %216 = sbr.rel (%p213) target = $region66
      $region65: #{down_block_forward.5} parent=5 // pred_region
        %s217 = ssub.s32 %s9, 1
        %s218 = sand.u32 %s48, 1
        %s219 = sand.u32 %s48, 1
        %s220 = smul.addr %s219, 64
        %s221 = scalar_lea.vmem [#allocation2], %s220
        // Predicated region
        $region67: #{down_block_forward.5} parent=65 // pred_check
          %p222 = pneg %p61
        $region68: #{down_block_forward.5} parent=65 // pred_check_branch
          %224 = sbr.rel (%p222) target = $region70
        $region69: #{down_block_forward.5} parent=65 // pred_region
          _
        $region70: #{down_block_forward.5} parent=65 // pred_fallthru
          _
        %s225 = smul.u32 8, %s14
        %p226 = scmp.lt.s32.totalorder %s225, 15
        %s227 = scalar_select %p226, %s225, 15
        %s228 = smul.addr %s227, 8
        %s229 = scalar_lea.vmem %s0, %s228
        %p230 = pneg %p35
        %p231 = pneg %p32
        %s232 = sand.u32 %s48, 1
        %s233 = sand.u32 %s48, 1
        %s234 = smul.addr %s233, 64
        %s235 = scalar_lea.vmem [#allocation2], %s234
        %p236 = pneg %p61
        %p237 = pneg %p58
        %p238 = pneg %p82
        %p239 = pneg %p79
        %p240 = pneg %p108
        %p241 = pneg %p105
        %s242 = smul.u32 8, %s14
        %p243 = scmp.lt.s32.totalorder %s242, 15
        %s244 = scalar_select %p243, %s242, 15
        %s245 = smul.addr %s244, 8
        %s246 = scalar_lea.vmem %s3, %s245
        %s247 = smul.u32 8, %s14
        %p248 = scmp.lt.s32.totalorder %s247, 15
        %s249 = scalar_select %p248, %s247, 15
        %s250 = smul.addr %s249, 8
        %s251 = scalar_lea.vmem %s0, %s250
        %s252 = smul.u32 8, %s14
        %s253 = smul.u32 8, %s14
        %s254 = smul.u32 8, %s14
        %p255 = scmp.lt.s32.totalorder %s254, 15
        %s256 = scalar_select %p255, %s254, 15
        %s257 = smul.addr %s256, 8
        %s258 = scalar_lea.vmem %s3, %s257
        %s259 = smul.u32 8, %s14
        %v260 = vld [vmem:[%s2] sm:$0xf]
        %v261 = vld [vmem:[%s251] sm:$0xff]
        %v262 = vld [vmem:[%s251 + $0x8] sm:$0xff]
        %v263 = vld [vmem:[%s251 + $0x10] sm:$0xff]
        %v264 = vld [vmem:[%s251 + $0x18] sm:$0xff]
        %v265 = vld [vmem:[%s251 + $0x20] sm:$0xff]
        %v266 = vld [vmem:[%s251 + $0x28] sm:$0xff]
        %v267 = vld [vmem:[%s251 + $0x30] sm:$0xff]
        %v268 = vld [vmem:[%s251 + $0x38] sm:$0xff]
        %v269 = vlaneseq
        %v270 = vshrl.u32 %v269, 7
        %v271 = vsub.s32 0, %v270
        %v272 = vrot.slane %v260, %v271
        %v273 = vmul.f32 %v261, %v272
        %v274 = vmul.f32 %v262, %v272
        %v275 = vmul.f32 %v263, %v272
        %v276 = vmul.f32 %v264, %v272
        %v277 = vmul.f32 %v265, %v272
        %v278 = vmul.f32 %v266, %v272
        %v279 = vmul.f32 %v267, %v272
        %v280 = vmul.f32 %v268, %v272
        %v281 = vlaneseq
        %v282 = vshrl.u32 %v281, 7
        %v283 = vsub.s32 1, %v282
        %v284 = vrot.slane %v260, %v283
        %v285 = vadd.f32 %v273, %v284
        %v286 = vadd.f32 %v274, %v284
        %v287 = vadd.f32 %v275, %v284
        %v288 = vadd.f32 %v276, %v284
        %v289 = vadd.f32 %v277, %v284
        %v290 = vadd.f32 %v278, %v284
        %v291 = vadd.f32 %v279, %v284
        %v292 = vadd.f32 %v280, %v284
        %v293 = vld [vmem:[%s221] sm:$0xff]
        %v294 = vld [vmem:[%s221 + $0x8] sm:$0xff]
        %v295 = vld [vmem:[%s221 + $0x10] sm:$0xff]
        %v296 = vld [vmem:[%s221 + $0x18] sm:$0xff]
        %v297 = vld [vmem:[%s221 + $0x20] sm:$0xff]
        %v298 = vld [vmem:[%s221 + $0x28] sm:$0xff]
        %v299 = vld [vmem:[%s221 + $0x30] sm:$0xff]
        %v300 = vld [vmem:[%s221 + $0x38] sm:$0xff]
        %v301 = vlaneseq
        %v302 = vshrl.u32 %v301, 7
        %v303 = vsub.s32 2, %v302
        %v304 = vrot.slane %v260, %v303
        %v305 = vmul.f32 %v293, %v304
        %v306 = vmul.f32 %v294, %v304
        %v307 = vmul.f32 %v295, %v304
        %v308 = vmul.f32 %v296, %v304
        %v309 = vmul.f32 %v297, %v304
        %v310 = vmul.f32 %v298, %v304
        %v311 = vmul.f32 %v299, %v304
        %v312 = vmul.f32 %v300, %v304
        %v313 = vadd.f32 %v285, %v305
        %v314 = vadd.f32 %v286, %v306
        %v315 = vadd.f32 %v287, %v307
        %v316 = vadd.f32 %v288, %v308
        %v317 = vadd.f32 %v289, %v309
        %v318 = vadd.f32 %v290, %v310
        %v319 = vadd.f32 %v291, %v311
        %v320 = vadd.f32 %v292, %v312
        %v321 = vlaneseq
        %v322 = vshrl.u32 %v321, 7
        %v323 = vsub.s32 3, %v322
        %v324 = vrot.slane %v260, %v323
        %v325 = vadd.f32 %v313, %v324
        %v326 = vadd.f32 %v314, %v324
        %v327 = vadd.f32 %v315, %v324
        %v328 = vadd.f32 %v316, %v324
        %v329 = vadd.f32 %v317, %v324
        %v330 = vadd.f32 %v318, %v324
        %v331 = vadd.f32 %v319, %v324
        %v332 = vadd.f32 %v320, %v324
        %v333 = vmax.f32 %v325, 0.0
        %v334 = vmax.f32 %v326, 0.0
        %v335 = vmax.f32 %v327, 0.0
        %v336 = vmax.f32 %v328, 0.0
        %v337 = vmax.f32 %v329, 0.0
        %v338 = vmax.f32 %v330, 0.0
        %v339 = vmax.f32 %v331, 0.0
        %v340 = vmax.f32 %v332, 0.0
        %341 = vst [vmem:[%s258] sm:$0xff] %v333
        %342 = vst [vmem:[%s258 + $0x8] sm:$0xff] %v334
        %343 = vst [vmem:[%s258 + $0x10] sm:$0xff] %v335
        %344 = vst [vmem:[%s258 + $0x18] sm:$0xff] %v336
        %345 = vst [vmem:[%s258 + $0x20] sm:$0xff] %v337
        %346 = vst [vmem:[%s258 + $0x28] sm:$0xff] %v338
        %347 = vst [vmem:[%s258 + $0x30] sm:$0xff] %v339
        %348 = vst [vmem:[%s258 + $0x38] sm:$0xff] %v340
        %s349 = smul.u32 8, %s14
        %p350 = scmp.lt.s32.totalorder %s349, 15
        %s351 = scalar_select %p350, %s349, 15
        %s352 = smul.addr %s351, 8
        %s353 = scalar_lea.vmem %s3, %s352
        // Predicated region
        $region71: #{down_block_forward.5} parent=65 // pred_check
          %p354 = pneg %p105
        $region72: #{down_block_forward.5} parent=65 // pred_check_branch
          %356 = sbr.rel (%p354) target = $region74
        $region73: #{down_block_forward.5} parent=65 // pred_region
          %s357 = smul.u32 8, %s14
        $region74: #{down_block_forward.5} parent=65 // pred_fallthru
          _
      $region66: #{down_block_forward.5} parent=5 // pred_fallthru
        _
      %p358 = scmp.le.s32.totalorder 2, %s9
      // Predicated region
      $region75: #{down_block_forward.5} parent=5 // pred_check
        %p359 = pneg %p358
      $region76: #{down_block_forward.5} parent=5 // pred_check_branch
        %361 = sbr.rel (%p359) target = $region78
      $region77: #{down_block_forward.5} parent=5 // pred_region
        %s362 = ssub.s32 %s9, 2
        // Predicated region
        $region79: #{down_block_forward.5} parent=77 // pred_check
          %p363 = pneg %p111
        $region80: #{down_block_forward.5} parent=77 // pred_check_branch
          %365 = sbr.rel (%p363) target = $region82
        $region81: #{down_block_forward.5} parent=77 // pred_region
          %s366 = smul.u32 8, %s15
          %p367 = scmp.lt.s32.totalorder %s366, 15
          %s368 = scalar_select %p367, %s366, 15
          %s369 = smul.addr %s368, 8
          %s370 = scalar_lea.vmem %s3, %s369
        $region82: #{down_block_forward.5} parent=77 // pred_fallthru
          _
      $region78: #{down_block_forward.5} parent=5 // pred_fallthru
        _
    $region6: #{down_block_forward.5} parent=1 // loop_footer
      %s13 = sadd.s32 1, %s9
    $region7: #{down_block_forward.5} parent=1 // loop_footer_branch
      %8 = sbr.rel target = $region3
    $region8: #{down_block_forward.5} parent=1 // loop_exit
      _

// kernel: down_block_forward.4
$region0: #{down_block_forward.4}
  #allocation0 [shape = 'u32[]', space=smem, size = 0x4, offset = 0x4, fixed_abs, tag = 'smem constant byte address 0x4 - core index']
  #allocation1 [shape = 'u32[144,128]{1,0:T(1,128)}', space=vmem, size = 0x12000, scoped, tag = 'internal scratch']
  #allocation2 [shape = 'f32[10,24,128]{2,1,0:T(8,128)}', space=vmem, size = 0x1e000, scoped, tag = 'scratch operand']
  %s0 = inlined_call_operand.vmem [shape: f32[128,256], index: 0, kind: input, shape index: {}]
  %s1 = inlined_call_operand.vmem [shape: f32[2,128], index: 1, kind: input, shape index: {}]
  %s2 = inlined_call_operand.vmem [shape: bf16[9,128,128], index: 2, kind: input, shape index: {}]
  %s3 = inlined_call_operand.vmem [shape: f32[2,64,128], index: 3, kind: output, shape index: {0}]
  %s4 = inlined_call_operand.vmem [shape: f32[2,2,128], index: 4, kind: output, shape index: {1}]
  %5 = xla_tuple %s3, %s4
  %s6 = sld [smem:[#allocation0]]
  $region91: #{down_block_forward.4} parent=0
    _
  %s8 = ssub.s32 1, %s6
  %s9 = scalar_select 0, %s8, %s6
  $region1: #{down_block_forward.4} parent=0
    #allocation3 [shape = 'u8[65536]{0}', space=vmem, size = 0x10000, scoped, tag = 'input window, operand 0']
    loop: start=0, step=1, limit=4
    $region2: #{down_block_forward.4} parent=1 // loop_pre_header
      _
    $region3: #{down_block_forward.4} parent=1 // loop_header
      %s11 = sphi 0, %s15
      %p12 = scmp.ge.s32.totalorder %s11, 4
      %s21 = sphi 0, %s23
      %s24 = sphi 0, %s21
      %s25 = sphi 0, %s24
      %s41 = sphi 0, %s25
      %s45 = sphi 0, %s45
      %s47 = sphi 0, %s45
      %s48 = sphi 0, %s47
      %s62 = sphi 0, %s48
      %s66 = sphi 0, %s66
      %s68 = sphi 0, %s66
      %s69 = sphi 0, %s68
      %s83 = sphi 0, %s69
      %s89 = sphi 0, %s91
      %s92 = sphi 0, %s89
      %s93 = sphi 0, %s92
      %s109 = sphi 0, %s93
      %s115 = sphi 0, %s117
      %s118 = sphi 0, %s115
      %s119 = sphi 0, %s118
      %s135 = sphi 0, %s119
    $region4: #{down_block_forward.4} parent=1 // loop_header_branch
      %14 = sbr.rel (%p12) target = $region8
    $region5: #{down_block_forward.4} parent=1 // loop_body
      %s16 = ssub.s32 %s11, 1
      %s17 = ssub.s32 %s11, 2
      %s18 = sadd.s32 %s11, 1
      %s19 = ssub.s32 %s11, %s18
      %p20 = scmp.eq.s32.totalorder %s19, 0
      %s22 = sadd.s32 %s21, 1
      %s23 = scalar_select %p20, %s21, %s22
      %p26 = pneg %p20
      %p27 = scmp.eq.s32.totalorder %s11, 1
      %p28 = por %p26, %p27
      %p29 = scmp.ne.s32.totalorder %s21, %s24
      %p30 = scmp.eq.s32.totalorder %s11, 0
      %p31 = por %p29, %p30
      %p32 = scmp.ne.s32.totalorder %s21, %s24
      %p33 = scmp.eq.s32.totalorder %s16, 1
      %p34 = por %p32, %p33
      %p35 = scmp.ne.s32.totalorder %s24, %s25
      %p36 = scmp.eq.s32.totalorder %s16, 0
      %p37 = por %p35, %p36
      %p38 = scmp.ne.s32.totalorder %s24, %s25
      %p39 = scmp.eq.s32.totalorder %s17, 1
      %p40 = por %p38, %p39
      %p42 = scmp.ne.s32.totalorder %s25, %s41
      %p43 = scmp.eq.s32.totalorder %s17, 0
      %p44 = por %p42, %p43
      %s46 = sadd.s32 %s45, 1
      %p49 = scmp.eq.s32.totalorder %s11, 1
      %p50 = scmp.ne.s32.totalorder %s45, %s47
      %p51 = scmp.eq.s32.totalorder %s11, 0
      %p52 = por %p50, %p51
      %p53 = scmp.ne.s32.totalorder %s45, %s47
      %p54 = scmp.eq.s32.totalorder %s16, 1
      %p55 = por %p53, %p54
      %p56 = scmp.ne.s32.totalorder %s47, %s48
      %p57 = scmp.eq.s32.totalorder %s16, 0
      %p58 = por %p56, %p57
      %p59 = scmp.ne.s32.totalorder %s47, %s48
      %p60 = scmp.eq.s32.totalorder %s17, 1
      %p61 = por %p59, %p60
      %p63 = scmp.ne.s32.totalorder %s48, %s62
      %p64 = scmp.eq.s32.totalorder %s17, 0
      %p65 = por %p63, %p64
      %s67 = sadd.s32 %s66, 1
      %p70 = scmp.eq.s32.totalorder %s11, 1
      %p71 = scmp.ne.s32.totalorder %s66, %s68
      %p72 = scmp.eq.s32.totalorder %s11, 0
      %p73 = por %p71, %p72
      %p74 = scmp.ne.s32.totalorder %s66, %s68
      %p75 = scmp.eq.s32.totalorder %s16, 1
      %p76 = por %p74, %p75
      %p77 = scmp.ne.s32.totalorder %s68, %s69
      %p78 = scmp.eq.s32.totalorder %s16, 0
      %p79 = por %p77, %p78
      %p80 = scmp.ne.s32.totalorder %s68, %s69
      %p81 = scmp.eq.s32.totalorder %s17, 1
      %p82 = por %p80, %p81
      %p84 = scmp.ne.s32.totalorder %s69, %s83
      %p85 = scmp.eq.s32.totalorder %s17, 0
      %p86 = por %p84, %p85
      %s87 = ssub.s32 %s11, %s18
      %p88 = scmp.eq.s32.totalorder %s87, 0
      %s90 = sadd.s32 %s89, 1
      %s91 = scalar_select %p88, %s89, %s90
      %p94 = pneg %p88
      %p95 = scmp.eq.s32.totalorder %s11, 1
      %p96 = por %p94, %p95
      %p97 = scmp.ne.s32.totalorder %s89, %s92
      %p98 = scmp.eq.s32.totalorder %s11, 0
      %p99 = por %p97, %p98
      %p100 = scmp.ne.s32.totalorder %s89, %s92
      %p101 = scmp.eq.s32.totalorder %s16, 1
      %p102 = por %p100, %p101
      %p103 = scmp.ne.s32.totalorder %s92, %s93
      %p104 = scmp.eq.s32.totalorder %s16, 0
      %p105 = por %p103, %p104
      %p106 = scmp.ne.s32.totalorder %s92, %s93
      %p107 = scmp.eq.s32.totalorder %s17, 1
      %p108 = por %p106, %p107
      %p110 = scmp.ne.s32.totalorder %s93, %s109
      %p111 = scmp.eq.s32.totalorder %s17, 0
      %p112 = por %p110, %p111
      %s113 = ssub.s32 %s11, %s18
      %p114 = scmp.eq.s32.totalorder %s113, 0
      %s116 = sadd.s32 %s115, 1
      %s117 = scalar_select %p114, %s115, %s116
      %p120 = pneg %p114
      %p121 = scmp.eq.s32.totalorder %s11, 1
      %p122 = por %p120, %p121
      %p123 = scmp.ne.s32.totalorder %s115, %s118
      %p124 = scmp.eq.s32.totalorder %s11, 0
      %p125 = por %p123, %p124
      %p126 = scmp.ne.s32.totalorder %s115, %s118
      %p127 = scmp.eq.s32.totalorder %s16, 1
      %p128 = por %p126, %p127
      %p129 = scmp.ne.s32.totalorder %s118, %s119
      %p130 = scmp.eq.s32.totalorder %s16, 0
      %p131 = por %p129, %p130
      %p132 = scmp.ne.s32.totalorder %s118, %s119
      %p133 = scmp.eq.s32.totalorder %s17, 1
      %p134 = por %p132, %p133
      %p136 = scmp.ne.s32.totalorder %s119, %s135
      %p137 = scmp.eq.s32.totalorder %s17, 0
      %p138 = por %p136, %p137
      %p139 = scmp.le.s32.totalorder 1, %s11
      %p140 = scmp.lt.s32.totalorder %s11, 3
      %p141 = pnand %p139, %p140
      %p142 = pneg %p141
      // Predicated region
      $region9: #{down_block_forward.4} parent=5 // pred_check
        _
      $region10: #{down_block_forward.4} parent=5 // pred_check_branch
        %144 = sbr.rel (%p141) target = $region12
      $region11: #{down_block_forward.4} parent=5 // pred_region
        %s145 = ssub.s32 %s11, 1
        // Predicated region
        $region13: #{down_block_forward.4} parent=11 // pred_check
          %p146 = pneg %p58
        $region14: #{down_block_forward.4} parent=11 // pred_check_branch
          %148 = sbr.rel (%p146) target = $region16
        $region15: #{down_block_forward.4} parent=11 // pred_region
          _
        $region16: #{down_block_forward.4} parent=11 // pred_fallthru
          _
        // Predicated region
        $region17: #{down_block_forward.4} parent=11 // pred_check
          %p149 = pneg %p79
        $region18: #{down_block_forward.4} parent=11 // pred_check_branch
          %151 = sbr.rel (%p149) target = $region20
        $region19: #{down_block_forward.4} parent=11 // pred_region
          _
        $region20: #{down_block_forward.4} parent=11 // pred_fallthru
          _
      $region12: #{down_block_forward.4} parent=5 // pred_fallthru
        _
      %p152 = scmp.lt.s32.totalorder %s11, 2
      // Predicated region
      $region21: #{down_block_forward.4} parent=5 // pred_check
        %p153 = pneg %p152
      $region22: #{down_block_forward.4} parent=5 // pred_check_branch
        %155 = sbr.rel (%p153) target = $region24
      $region23: #{down_block_forward.4} parent=5 // pred_region
        // Predicated region
        $region25: #{down_block_forward.4} parent=23 // pred_check
          %p156 = pneg %p31
        $region26: #{down_block_forward.4} parent=23 // pred_check_branch
          %158 = sbr.rel (%p156) target = $region28
        $region27: #{down_block_forward.4} parent=23 // pred_region
          %s159 = sand.u32 %s21, 1
          %s160 = sand.u32 %s21, 1
          %s161 = smul.addr %s160, 64
          %s162 = scalar_lea.vmem [#allocation3], %s161
          %s163 = smul.u32 8, %s11
          %s164 = smul.addr %s163, 2
          %s165 = smul.addr %s164, 8
          %s166 = scalar_lea.vmem %s0, %s165
          // Predicated region
          $region29: #{down_block_forward.4} parent=27 // pred_check
            _
          $region30: #{down_block_forward.4} parent=27 // pred_check_branch
            %168 = sbr.rel (0) target = $region32
          $region31: #{down_block_forward.4} parent=27 // pred_region
            // Predicated region
            $region33: #{down_block_forward.4} parent=31 // pred_check
              _
            $region34: #{down_block_forward.4} parent=31 // pred_check_branch
              %170 = sbr.rel (0) target = $region36
            $region35: #{down_block_forward.4} parent=31 // pred_region
              // Predicated region
              $region48: #{down_block_forward.4} parent=35 // pred_check
                _
              $region49: #{down_block_forward.4} parent=35 // pred_check_branch
                %199 = sbr.rel (0) target = $region51
              $region50: #{down_block_forward.4} parent=35 // pred_region
                loop: start=0, step=1, limit=1
                $region52: #{down_block_forward.4} parent=50 // loop_pre_header
                  _
                $region53: #{down_block_forward.4} parent=50 // loop_header
                  %s201 = sphi 0, %s205
                  %p202 = scmp.ge.s32.totalorder %s201, 1
                  %s206 = sphi %s166, %s166
                  %s207 = sphi %s162, %s162
                $region54: #{down_block_forward.4} parent=50 // loop_header_branch
                  %204 = sbr.rel (%p202) target = $region58
                $region55: #{down_block_forward.4} parent=50 // loop_body
                  %v208 = vld [vmem:[%s206] sm:$0xff]
                  %209 = vst [vmem:[%s207] sm:$0xff] %v208
                  %v210 = vld [vmem:[%s206 + $0x10] sm:$0xff]
                  %211 = vst [vmem:[%s207 + $0x8] sm:$0xff] %v210
                  %v212 = vld [vmem:[%s206 + $0x20] sm:$0xff]
                  %213 = vst [vmem:[%s207 + $0x10] sm:$0xff] %v212
                  %v214 = vld [vmem:[%s206 + $0x30] sm:$0xff]
                  %215 = vst [vmem:[%s207 + $0x18] sm:$0xff] %v214
                  %v216 = vld [vmem:[%s206 + $0x40] sm:$0xff]
                  %217 = vst [vmem:[%s207 + $0x20] sm:$0xff] %v216
                  %v218 = vld [vmem:[%s206 + $0x50] sm:$0xff]
                  %219 = vst [vmem:[%s207 + $0x28] sm:$0xff] %v218
                  %v220 = vld [vmem:[%s206 + $0x60] sm:$0xff]
                  %221 = vst [vmem:[%s207 + $0x30] sm:$0xff] %v220
                  %v222 = vld [vmem:[%s206 + $0x70] sm:$0xff]
                  %223 = vst [vmem:[%s207 + $0x38] sm:$0xff] %v222
                $region56: #{down_block_forward.4} parent=50 // loop_footer
                  %s205 = sadd.s32 1, %s201
                $region57: #{down_block_forward.4} parent=50 // loop_footer_branch
                  %200 = sbr.rel target = $region53
                $region58: #{down_block_forward.4} parent=50 // loop_exit
                  _
              $region51: #{down_block_forward.4} parent=35 // pred_fallthru
                _
              // Predicated region
              $region59: #{down_block_forward.4} parent=35 // pred_check
                _
              $region60: #{down_block_forward.4} parent=35 // pred_check_branch
                %225 = sbr.rel target = $region62
              $region61: #{down_block_forward.4} parent=35 // pred_region
                _
              $region62: #{down_block_forward.4} parent=35 // pred_fallthru
                _
            $region36: #{down_block_forward.4} parent=31 // pred_fallthru
              _
            // Predicated region
            $region37: #{down_block_forward.4} parent=31 // pred_check
              _
            $region38: #{down_block_forward.4} parent=31 // pred_check_branch
              %172 = sbr.rel target = $region40
            $region39: #{down_block_forward.4} parent=31 // pred_region
              loop: start=0, step=1, limit=1
              $region41: #{down_block_forward.4} parent=39 // loop_pre_header
                _
              $region42: #{down_block_forward.4} parent=39 // loop_header
                %s175 = sphi 0, %s179
                %p176 = scmp.ge.s32.totalorder %s175, 1
                %s180 = sphi %s166, %s166
                %s181 = sphi %s162, %s162
              $region43: #{down_block_forward.4} parent=39 // loop_header_branch
                %178 = sbr.rel (%p176) target = $region47
              $region44: #{down_block_forward.4} parent=39 // loop_body
                %v182 = vld [vmem:[%s180] sm:$0xff]
                %183 = vst [vmem:[%s181] sm:$0xff] %v182
                %v184 = vld [vmem:[%s180 + $0x10] sm:$0xff]
                %185 = vst [vmem:[%s181 + $0x8] sm:$0xff] %v184
                %v186 = vld [vmem:[%s180 + $0x20] sm:$0xff]
                %187 = vst [vmem:[%s181 + $0x10] sm:$0xff] %v186
                %v188 = vld [vmem:[%s180 + $0x30] sm:$0xff]
                %189 = vst [vmem:[%s181 + $0x18] sm:$0xff] %v188
                %v190 = vld [vmem:[%s180 + $0x40] sm:$0xff]
                %191 = vst [vmem:[%s181 + $0x20] sm:$0xff] %v190
                %v192 = vld [vmem:[%s180 + $0x50] sm:$0xff]
                %193 = vst [vmem:[%s181 + $0x28] sm:$0xff] %v192
                %v194 = vld [vmem:[%s180 + $0x60] sm:$0xff]
                %195 = vst [vmem:[%s181 + $0x30] sm:$0xff] %v194
                %v196 = vld [vmem:[%s180 + $0x70] sm:$0xff]
                %197 = vst [vmem:[%s181 + $0x38] sm:$0xff] %v196
              $region45: #{down_block_forward.4} parent=39 // loop_footer
                %s179 = sadd.s32 1, %s175
              $region46: #{down_block_forward.4} parent=39 // loop_footer_branch
                %174 = sbr.rel target = $region42
              $region47: #{down_block_forward.4} parent=39 // loop_exit
                _
            $region40: #{down_block_forward.4} parent=31 // pred_fallthru
              _
          $region32: #{down_block_forward.4} parent=27 // pred_fallthru
            _
          %226 = vnop
        $region28: #{down_block_forward.4} parent=23 // pred_fallthru
          _
      $region24: #{down_block_forward.4} parent=5 // pred_fallthru
        _
      %p227 = scmp.le.s32.totalorder 1, %s11
      %p228 = scmp.lt.s32.totalorder %s11, 3
      %p229 = pnand %p227, %p228
      %p230 = pneg %p229
      // Predicated region
      $region63: #{down_block_forward.4} parent=5 // pred_check
        _
      $region64: #{down_block_forward.4} parent=5 // pred_check_branch
        %232 = sbr.rel (%p229) target = $region66
      $region65: #{down_block_forward.4} parent=5 // pred_region
        %s233 = ssub.s32 %s11, 1
        %s234 = sand.u32 %s24, 1
        %s235 = sand.u32 %s24, 1
        %s236 = smul.addr %s235, 64
        %s237 = scalar_lea.vmem [#allocation3], %s236
        // Predicated region
        $region67: #{down_block_forward.4} parent=65 // pred_check
          %p238 = pneg %p37
        $region68: #{down_block_forward.4} parent=65 // pred_check_branch
          %240 = sbr.rel (%p238) target = $region70
        $region69: #{down_block_forward.4} parent=65 // pred_region
          _
        $region70: #{down_block_forward.4} parent=65 // pred_fallthru
          _
        %s241 = sand.u32 %s24, 1
        %s242 = sand.u32 %s24, 1
        %s243 = smul.addr %s242, 64
        %s244 = scalar_lea.vmem [#allocation3], %s243
        %p245 = pneg %p37
        %p246 = pneg %p34
        %p247 = pneg %p58
        %p248 = pneg %p55
        %p249 = pneg %p79
        %p250 = pneg %p76
        %p251 = pneg %p105
        %p252 = pneg %p102
        %p253 = scmp.lt.s32.totalorder %s16, 1
        %s254 = scalar_select %p253, %s16, 1
        %s255 = smul.addr %s254, 8
        %s256 = smul.addr %s255, 8
        %s257 = scalar_lea.vmem %s3, %s256
        %p258 = pneg %p131
        %p259 = pneg %p128
        %p260 = scmp.lt.s32.totalorder %s16, 1
        %s261 = scalar_select %p260, %s16, 1
        %s262 = smul.addr %s261, 2
        %s263 = scalar_lea.vmem %s4, %s262
        %s264 = smul.u32 8, %s16
        %p265 = scmp.lt.s32.totalorder %s16, 1
        %s266 = scalar_select %p265, %s16, 1
        %s267 = smul.addr %s266, 8
        %s268 = smul.addr %s267, 8
        %s269 = scalar_lea.vmem %s3, %s268
        %p270 = scmp.lt.s32.totalorder %s16, 1
        %s271 = scalar_select %p270, %s16, 1
        %s272 = smul.addr %s271, 2
        %s273 = scalar_lea.vmem %s4, %s272
        %v275 = vld [vmem:[%s237] sm:$0xff]
        %v276 = vld [vmem:[%s237 + $0x8] sm:$0xff]
        %v277 = vld [vmem:[%s237 + $0x10] sm:$0xff]
        %v278 = vld [vmem:[%s237 + $0x18] sm:$0xff]
        %v279 = vld [vmem:[%s237 + $0x20] sm:$0xff]
        %v280 = vld [vmem:[%s237 + $0x28] sm:$0xff]
        %v281 = vld [vmem:[%s237 + $0x30] sm:$0xff]
        %v282 = vld [vmem:[%s237 + $0x38] sm:$0xff]
        %v283 = vld [vmem:[%s1] sm:$0x1]
        %v284 = vlaneseq
        %v285 = vshrl.u32 %v284, 7
        %v286 = vsub.s32 0, %v285
        %v287 = vrot.slane %v283, %v286
        %v288 = vmul.f32 %v275, %v287
        %v289 = vmul.f32 %v276, %v287
        %v290 = vmul.f32 %v277, %v287
        %v291 = vmul.f32 %v278, %v287
        %v292 = vmul.f32 %v279, %v287
        %v293 = vmul.f32 %v280, %v287
        %v294 = vmul.f32 %v281, %v287
        %v295 = vmul.f32 %v282, %v287
        %v296 = vld [vmem:[%s1 + $0x1] sm:$0x1]
        %v297 = vlaneseq
        %v298 = vshrl.u32 %v297, 7
        %v299 = vsub.s32 0, %v298
        %v300 = vrot.slane %v296, %v299
        %v301 = vadd.f32 %v288, %v300
        %v302 = vadd.f32 %v289, %v300
        %v303 = vadd.f32 %v290, %v300
        %v304 = vadd.f32 %v291, %v300
        %v305 = vadd.f32 %v292, %v300
        %v306 = vadd.f32 %v293, %v300
        %v307 = vadd.f32 %v294, %v300
        %v308 = vadd.f32 %v295, %v300
        %v309 = vmax.f32 %v301, 0.0
        %v310 = vmax.f32 %v302, 0.0
        %v311 = vmax.f32 %v303, 0.0
        %v312 = vmax.f32 %v304, 0.0
        %v313 = vmax.f32 %v305, 0.0
        %v314 = vmax.f32 %v306, 0.0
        %v315 = vmax.f32 %v307, 0.0
        %v316 = vmax.f32 %v308, 0.0
        %317 = vst [vmem:[#allocation2] sm:$0xff] 0.0
        %318 = vst [vmem:[#allocation2 + $0x8] sm:$0xff] 0.0
        %319 = vst [vmem:[#allocation2 + $0x10] sm:$0xff] 0.0
        %320 = vst [vmem:[#allocation2 + $0x18] sm:$0xff] 0.0
        %321 = vst [vmem:[#allocation2 + $0x20] sm:$0xff] 0.0
        %322 = vst [vmem:[#allocation2 + $0x28] sm:$0xff] 0.0
        %323 = vst [vmem:[#allocation2 + $0x30] sm:$0xff] 0.0
        %324 = vst [vmem:[#allocation2 + $0x38] sm:$0xff] 0.0
        %325 = vst [vmem:[#allocation2 + $0x40] sm:$0xff] 0.0
        %326 = vst [vmem:[#allocation2 + $0x48] sm:$0xff] 0.0
        %327 = vst [vmem:[#allocation2 + $0x50] sm:$0xff] 0.0
        %328 = vst [vmem:[#allocation2 + $0x58] sm:$0xff] 0.0
        %329 = vst [vmem:[#allocation2 + $0x60] sm:$0xff] 0.0
        %330 = vst [vmem:[#allocation2 + $0x68] sm:$0xff] 0.0
        %331 = vst [vmem:[#allocation2 + $0x70] sm:$0xff] 0.0
        %332 = vst [vmem:[#allocation2 + $0x78] sm:$0xff] 0.0
        %333 = vst [vmem:[#allocation2 + $0x80] sm:$0xff] 0.0
        %334 = vst [vmem:[#allocation2 + $0x88] sm:$0xff] 0.0
        %335 = vst [vmem:[#allocation2 + $0x90] sm:$0xff] 0.0
        %336 = vst [vmem:[#allocation2 + $0x98] sm:$0xff] 0.0
        %337 = vst [vmem:[#allocation2 + $0xa0] sm:$0xff] 0.0
        %338 = vst [vmem:[#allocation2 + $0xa8] sm:$0xff] 0.0
        %339 = vst [vmem:[#allocation2 + $0xb0] sm:$0xff] 0.0
        %340 = vst [vmem:[#allocation2 + $0xb8] sm:$0xff] 0.0
        %341 = vst [vmem:[#allocation2 + $0xc0] sm:$0xff] 0.0
        %342 = vst [vmem:[#allocation2 + $0xc8] sm:$0xff] 0.0
        %343 = vst [vmem:[#allocation2 + $0xd0] sm:$0xff] 0.0
        %344 = vst [vmem:[#allocation2 + $0xd8] sm:$0xff] 0.0
        %345 = vst [vmem:[#allocation2 + $0xe0] sm:$0xff] 0.0
        %346 = vst [vmem:[#allocation2 + $0xe8] sm:$0xff] 0.0
        %s347 = scalar_lea.vmem [#allocation2], 24
        %348 = vst [vmem:[%s347 + $0x8] sm:$0xff] %v309
        %349 = vst [vmem:[%s347 + $0x20] sm:$0xff] %v310
        %350 = vst [vmem:[%s347 + $0x38] sm:$0xff] %v311
        %351 = vst [vmem:[%s347 + $0x50] sm:$0xff] %v312
        %352 = vst [vmem:[%s347 + $0x68] sm:$0xff] %v313
        %353 = vst [vmem:[%s347 + $0x80] sm:$0xff] %v314
        %354 = vst [vmem:[%s347 + $0x98] sm:$0xff] %v315
        %355 = vst [vmem:[%s347 + $0xb0] sm:$0xff] %v316
        %v356 = vld [vmem:[#allocation2 + $0x7] sm:$0xff]
        %v357 = vld [vmem:[#allocation2 + $0x1f] sm:$0xff]
        %v358 = vld [vmem:[#allocation2 + $0x37] sm:$0xff]
        %v359 = vld [vmem:[#allocation2 + $0x4f] sm:$0xff]
        %v360 = vld [vmem:[#allocation2 + $0x67] sm:$0xff]
        %v361 = vld [vmem:[#allocation2 + $0x7f] sm:$0xff]
        %v362 = vld [vmem:[#allocation2 + $0x97] sm:$0xff]
        %v363 = vld [vmem:[#allocation2 + $0xaf] sm:$0xff]
        %v364 = vpack.c.bf16 %v357, %v356
        %v365 = vpack.c.bf16 %v359, %v358
        %v366 = vpack.c.bf16 %v361, %v360
        %v367 = vpack.c.bf16 %v363, %v362
        %v368 = vld [vmem:[%s2] sm:$0xf]
        %v369 = vld [vmem:[%s2 + $0x4] sm:$0xf]
        %v370 = vld [vmem:[%s2 + $0x8] sm:$0xf]
        %v371 = vld [vmem:[%s2 + $0xc] sm:$0xf]
        %v372 = vld [vmem:[%s2 + $0x10] sm:$0xf]
        %v373 = vld [vmem:[%s2 + $0x14] sm:$0xf]
        %v374 = vld [vmem:[%s2 + $0x18] sm:$0xf]
        %v375 = vld [vmem:[%s2 + $0x1c] sm:$0xf]
        %v376 = vld [vmem:[%s2 + $0x20] sm:$0xf]
        %v377 = vld [vmem:[%s2 + $0x24] sm:$0xf]
        %v378 = vld [vmem:[%s2 + $0x28] sm:$0xf]
        %v379 = vld [vmem:[%s2 + $0x2c] sm:$0xf]
        %v380 = vld [vmem:[%s2 + $0x30] sm:$0xf]
        %v381 = vld [vmem:[%s2 + $0x34] sm:$0xf]
        %v382 = vld [vmem:[%s2 + $0x38] sm:$0xf]
        %v383 = vld [vmem:[%s2 + $0x3c] sm:$0xf]
        %v384 = vld [vmem:[#allocation2 + $0x8] sm:$0xff]
        %v385 = vld [vmem:[#allocation2 + $0x20] sm:$0xff]
        %v386 = vld [vmem:[#allocation2 + $0x38] sm:$0xff]
        %v387 = vld [vmem:[#allocation2 + $0x50] sm:$0xff]
        %v388 = vld [vmem:[#allocation2 + $0x68] sm:$0xff]
        %v389 = vld [vmem:[#allocation2 + $0x80] sm:$0xff]
        %v390 = vld [vmem:[#allocation2 + $0x98] sm:$0xff]
        %v391 = vld [vmem:[#allocation2 + $0xb0] sm:$0xff]
        %v392 = vpack.c.bf16 %v385, %v384
        %v393 = vpack.c.bf16 %v387, %v386
        %v394 = vpack.c.bf16 %v389, %v388
        %v395 = vpack.c.bf16 %v391, %v390
        %s396 = scalar_lea.vmem %s2, 64
        %v397 = vld [vmem:[%s396] sm:$0xf]
        %v398 = vld [vmem:[%s396 + $0x4] sm:$0xf]
        %v399 = vld [vmem:[%s396 + $0x8] sm:$0xf]
        %v400 = vld [vmem:[%s396 + $0xc] sm:$0xf]
        %v401 = vld [vmem:[%s396 + $0x10] sm:$0xf]
        %v402 = vld [vmem:[%s396 + $0x14] sm:$0xf]
        %v403 = vld [vmem:[%s396 + $0x18] sm:$0xf]
        %v404 = vld [vmem:[%s396 + $0x1c] sm:$0xf]
        %v405 = vld [vmem:[%s396 + $0x20] sm:$0xf]
        %v406 = vld [vmem:[%s396 + $0x24] sm:$0xf]
        %v407 = vld [vmem:[%s396 + $0x28] sm:$0xf]
        %v408 = vld [vmem:[%s396 + $0x2c] sm:$0xf]
        %v409 = vld [vmem:[%s396 + $0x30] sm:$0xf]
        %v410 = vld [vmem:[%s396 + $0x34] sm:$0xf]
        %v411 = vld [vmem:[%s396 + $0x38] sm:$0xf]
        %v412 = vld [vmem:[%s396 + $0x3c] sm:$0xf]
        %v429 = vunpack.c.l.b16 %v397
        %v430 = vunpack.c.l.b16 %v398
        %v431 = vunpack.c.l.b16 %v399
        %v432 = vunpack.c.l.b16 %v400
        %v433 = vunpack.c.l.b16 %v401
        %v434 = vunpack.c.l.b16 %v402
        %v435 = vunpack.c.l.b16 %v403
        %v436 = vunpack.c.l.b16 %v404
        %v437 = vunpack.c.l.b16 %v405
        %v438 = vunpack.c.l.b16 %v406
        %v439 = vunpack.c.l.b16 %v407
        %v440 = vunpack.c.l.b16 %v408
        %v441 = vunpack.c.l.b16 %v409
        %v442 = vunpack.c.l.b16 %v410
        %v443 = vunpack.c.l.b16 %v411
        %v444 = vunpack.c.l.b16 %v412
        %v445 = vpack.c.b16 %v430, %v429
        %v446 = vpack.c.b16 %v432, %v431
        %v447 = vpack.c.b16 %v434, %v433
        %v448 = vpack.c.b16 %v436, %v435
        %v449 = vpack.c.b16 %v438, %v437
        %v450 = vpack.c.b16 %v440, %v439
        %v451 = vpack.c.b16 %v442, %v441
        %v452 = vpack.c.b16 %v444, %v443
        %461 = vmatprep.subr.bf16.mxu0 0
        %462 = vmatpush1.bf16.msra.mxu0 %v445
        %463 = vmatprep.subr.bf16.mxu0 0
        %464 = vmatpush1.bf16.msra.mxu0 %v446
        %465 = vmatprep.subr.bf16.mxu0 0
        %466 = vmatpush1.bf16.msra.mxu0 %v447
        %467 = vmatprep.subr.bf16.mxu0 0
        %468 = vmatpush1.bf16.msra.mxu0 %v448
        %469 = vmatprep.subr.bf16.mxu0 0
        %470 = vmatpush1.bf16.msra.mxu0 %v449
        %471 = vmatprep.subr.bf16.mxu0 0
        %472 = vmatpush1.bf16.msra.mxu0 %v450
        %473 = vmatprep.subr.bf16.mxu0 0
        %474 = vmatpush1.bf16.msra.mxu0 %v451
        %475 = vmatprep.subr.bf16.mxu0 0
        %476 = vmatpush1.bf16.msra.mxu0 %v452
        %477 = vmatprep.subr.bf16.mxu0 0
        %478 = vmatpush1.bf16.msra.mxu0 0
        %479 = vmatprep.subr.bf16.mxu0 0
        %480 = vmatpush1.bf16.msra.mxu0 0
        %481 = vmatprep.subr.bf16.mxu0 0
        %482 = vmatpush1.bf16.msra.mxu0 0
        %483 = vmatprep.subr.bf16.mxu0 0
        %484 = vmatpush1.bf16.msra.mxu0 0
        %485 = vmatprep.subr.bf16.mxu0 0
        %486 = vmatpush1.bf16.msra.mxu0 0
        %487 = vmatprep.subr.bf16.mxu0 0
        %488 = vmatpush1.bf16.msra.mxu0 0
        %489 = vmatprep.subr.bf16.mxu0 0
        %490 = vmatpush1.bf16.msra.mxu0 0
        %491 = vmatprep.subr.bf16.mxu0 0
        %492 = vmatpush1.bf16.msra.mxu0 0
        %493 = vmatprep.mubr.bf16.mxu0 0
        %494 = vmatmul.mubr.bf16.gmra.mrb[0].mxu0 %v392
        %v495 = vpop.f32.mrb[0].mxu0
        %v496 = vadd.f32 0.0, %v495
        %v497 = vpop.f32.mrb[0].mxu0
        %v498 = vpop.f32.mrb[0].mxu0
        %v499 = vadd.f32 0.0, %v498
        %v500 = vpop.f32.mrb[0].mxu0
        %501 = vmatprep.mubr.bf16.mxu0 0
        %502 = vmatmul.mubr.bf16.gmra.mrb[0].mxu0 %v393
        %v503 = vpop.f32.mrb[0].mxu0
        %v504 = vadd.f32 0.0, %v503
        %v505 = vpop.f32.mrb[0].mxu0
        %v506 = vpop.f32.mrb[0].mxu0
        %v507 = vadd.f32 0.0, %v506
        %v508 = vpop.f32.mrb[0].mxu0
        %509 = vmatprep.mubr.bf16.mxu0 0
        %510 = vmatmul.mubr.bf16.gmra.mrb[0].mxu0 %v394
        %v511 = vpop.f32.mrb[0].mxu0
        %v512 = vadd.f32 0.0, %v511
        %v513 = vpop.f32.mrb[0].mxu0
        %v514 = vpop.f32.mrb[0].mxu0
        %v515 = vadd.f32 0.0, %v514
        %v516 = vpop.f32.mrb[0].mxu0
        %517 = vmatprep.mubr.bf16.mxu0 0
        %518 = vmatmul.mubr.bf16.gmra.mrb[0].mxu0 %v395
        %v519 = vpop.f32.mrb[0].mxu0
        %v520 = vadd.f32 0.0, %v519
        %v521 = vpop.f32.mrb[0].mxu0
        %v522 = vpop.f32.mrb[0].mxu0
        %v523 = vadd.f32 0.0, %v522
        %v524 = vpop.f32.mrb[0].mxu0
        %525 = vdwg.mxu0
        %v542 = vunpack.c.l.b16 %v368
        %v543 = vunpack.c.l.b16 %v369
        %v544 = vunpack.c.l.b16 %v370
        %v545 = vunpack.c.l.b16 %v371
        %v546 = vunpack.c.l.b16 %v372
        %v547 = vunpack.c.l.b16 %v373
        %v548 = vunpack.c.l.b16 %v374
        %v549 = vunpack.c.l.b16 %v375
        %v550 = vunpack.c.l.b16 %v376
        %v551 = vunpack.c.l.b16 %v377
        %v552 = vunpack.c.l.b16 %v378
        %v553 = vunpack.c.l.b16 %v379
        %v554 = vunpack.c.l.b16 %v380
        %v555 = vunpack.c.l.b16 %v381
        %v556 = vunpack.c.l.b16 %v382
        %v557 = vunpack.c.l.b16 %v383
        %v558 = vpack.c.b16 %v543, %v542
        %v559 = vpack.c.b16 %v545, %v544
        %v560 = vpack.c.b16 %v547, %v546
        %v561 = vpack.c.b16 %v549, %v548
        %v562 = vpack.c.b16 %v551, %v550
        %v563 = vpack.c.b16 %v553, %v552
        %v564 = vpack.c.b16 %v555, %v554
        %v565 = vpack.c.b16 %v557, %v556
        %574 = vmatprep.subr.bf16.mxu0 0
        %575 = vmatpush1.bf16.msra.mxu0 %v558
        %576 = vmatprep.subr.bf16.mxu0 0
        %577 = vmatpush1.bf16.msra.mxu0 %v559
        %578 = vmatprep.subr.bf16.mxu0 0
        %579 = vmatpush1.bf16.msra.mxu0 %v560
        %580 = vmatprep.subr.bf16.mxu0 0
        %581 = vmatpush1.bf16.msra.mxu0 %v561
        %582 = vmatprep.subr.bf16.mxu0 0
        %583 = vmatpush1.bf16.msra.mxu0 %v562
        %584 = vmatprep.subr.bf16.mxu0 0
        %585 = vmatpush1.bf16.msra.mxu0 %v563
        %586 = vmatprep.subr.bf16.mxu0 0
        %587 = vmatpush1.bf16.msra.mxu0 %v564
        %588 = vmatprep.subr.bf16.mxu0 0
        %589 = vmatpush1.bf16.msra.mxu0 %v565
        %590 = vmatprep.subr.bf16.mxu0 0
        %591 = vmatpush1.bf16.msra.mxu0 0
        %592 = vmatprep.subr.bf16.mxu0 0
        %593 = vmatpush1.bf16.msra.mxu0 0
        %594 = vmatprep.subr.bf16.mxu0 0
        %595 = vmatpush1.bf16.msra.mxu0 0
        %596 = vmatprep.subr.bf16.mxu0 0
        %597 = vmatpush1.bf16.msra.mxu0 0
        %598 = vmatprep.subr.bf16.mxu0 0
        %599 = vmatpush1.bf16.msra.mxu0 0
        %600 = vmatprep.subr.bf16.mxu0 0
        %601 = vmatpush1.bf16.msra.mxu0 0
        %602 = vmatprep.subr.bf16.mxu0 0
        %603 = vmatpush1.bf16.msra.mxu0 0
        %604 = vmatprep.subr.bf16.mxu0 0
        %605 = vmatpush1.bf16.msra.mxu0 0
        %606 = vmatprep.mubr.bf16.mxu0 0
        %607 = vmatmul.mubr.bf16.gmra.mrb[0].mxu0 %v364
        %v608 = vpop.f32.mrb[0].mxu0
        %v609 = vadd.f32 %v496, %v608
        %v610 = vpop.f32.mrb[0].mxu0
        %v611 = vpop.f32.mrb[0].mxu0
        %v612 = vadd.f32 %v499, %v611
        %v613 = vpop.f32.mrb[0].mxu0
        %614 = vmatprep.mubr.bf16.mxu0 0
        %615 = vmatmul.mubr.bf16.gmra.mrb[0].mxu0 %v365
        %v616 = vpop.f32.mrb[0].mxu0
        %v617 = vadd.f32 %v504, %v616
        %v618 = vpop.f32.mrb[0].mxu0
        %v619 = vpop.f32.mrb[0].mxu0
        %v620 = vadd.f32 %v507, %v619
        %v621 = vpop.f32.mrb[0].mxu0
        %622 = vmatprep.mubr.bf16.mxu0 0
        %623 = vmatmul.mubr.bf16.gmra.mrb[0].mxu0 %v366
        %v624 = vpop.f32.mrb[0].mxu0
        %v625 = vadd.f32 %v512, %v624
        %v626 = vpop.f32.mrb[0].mxu0
        %v627 = vpop.f32.mrb[0].mxu0
        %v628 = vadd.f32 %v515, %v627
        %v629 = vpop.f32.mrb[0].mxu0
        %630 = vmatprep.mubr.bf16.mxu0 0
        %631 = vmatmul.mubr.bf16.gmra.mrb[0].mxu0 %v367
        %v632 = vpop.f32.mrb[0].mxu0
        %v633 = vadd.f32 %v520, %v632
        %v634 = vpop.f32.mrb[0].mxu0
        %v635 = vpop.f32.mrb[0].mxu0
        %v636 = vadd.f32 %v523, %v635
        %v637 = vpop.f32.mrb[0].mxu0
        %638 = vdwg.mxu0
        %v639 = vld [vmem:[#allocation2 + $0x9] sm:$0xff]
        %v640 = vld [vmem:[#allocation2 + $0x21] sm:$0xff]
        %v641 = vld [vmem:[#allocation2 + $0x39] sm:$0xff]
        %v642 = vld [vmem:[#allocation2 + $0x51] sm:$0xff]
        %v643 = vld [vmem:[#allocation2 + $0x69] sm:$0xff]
        %v644 = vld [vmem:[#allocation2 + $0x81] sm:$0xff]
        %v645 = vld [vmem:[#allocation2 + $0x99] sm:$0xff]
        %v646 = vld [vmem:[#allocation2 + $0xb1] sm:$0xff]
        %v647 = vpack.c.bf16 %v640, %v639
        %v648 = vpack.c.bf16 %v642, %v641
        %v649 = vpack.c.bf16 %v644, %v643
        %v650 = vpack.c.bf16 %v646, %v645
        %s651 = scalar_lea.vmem %s2, 128
        %v652 = vld [vmem:[%s651] sm:$0xf]
        %v653 = vld [vmem:[%s651 + $0x4] sm:$0xf]
        %v654 = vld [vmem:[%s651 + $0x8] sm:$0xf]
        %v655 = vld [vmem:[%s651 + $0xc] sm:$0xf]
        %v656 = vld [vmem:[%s651 + $0x10] sm:$0xf]
        %v657 = vld [vmem:[%s651 + $0x14] sm:$0xf]
        %v658 = vld [vmem:[%s651 + $0x18] sm:$0xf]
        %v659 = vld [vmem:[%s651 + $0x1c] sm:$0xf]
        %v660 = vld [vmem:[%s651 + $0x20] sm:$0xf]
        %v661 = vld [vmem:[%s651 + $0x24] sm:$0xf]
        %v662 = vld [vmem:[%s651 + $0x28] sm:$0xf]
        %v663 = vld [vmem:[%s651 + $0x2c] sm:$0xf]
        %v664 = vld [vmem:[%s651 + $0x30] sm:$0xf]
        %v665 = vld [vmem:[%s651 + $0x34] sm:$0xf]
        %v666 = vld [vmem:[%s651 + $0x38] sm:$0xf]
        %v667 = vld [vmem:[%s651 + $0x3c] sm:$0xf]
        %v684 = vunpack.c.l.b16 %v652
        %v685 = vunpack.c.l.b16 %v653
        %v686 = vunpack.c.l.b16 %v654
        %v687 = vunpack.c.l.b16 %v655
        %v688 = vunpack.c.l.b16 %v656
        %v689 = vunpack.c.l.b16 %v657
        %v690 = vunpack.c.l.b16 %v658
        %v691 = vunpack.c.l.b16 %v659
        %v692 = vunpack.c.l.b16 %v660
        %v693 = vunpack.c.l.b16 %v661
        %v694 = vunpack.c.l.b16 %v662
        %v695 = vunpack.c.l.b16 %v663
        %v696 = vunpack.c.l.b16 %v664
        %v697 = vunpack.c.l.b16 %v665
        %v698 = vunpack.c.l.b16 %v666
        %v699 = vunpack.c.l.b16 %v667
        %v700 = vpack.c.b16 %v685, %v684
        %v701 = vpack.c.b16 %v687, %v686
        %v702 = vpack.c.b16 %v689, %v688
        %v703 = vpack.c.b16 %v691, %v690
        %v704 = vpack.c.b16 %v693, %v692
        %v705 = vpack.c.b16 %v695, %v694
        %v706 = vpack.c.b16 %v697, %v696
        %v707 = vpack.c.b16 %v699, %v698
        %716 = vmatprep.subr.bf16.mxu0 0
        %717 = vmatpush1.bf16.msra.mxu0 %v700
        %718 = vmatprep.subr.bf16.mxu0 0
        %719 = vmatpush1.bf16.msra.mxu0 %v701
        %720 = vmatprep.subr.bf16.mxu0 0
        %721 = vmatpush1.bf16.msra.mxu0 %v702
        %722 = vmatprep.subr.bf16.mxu0 0
        %723 = vmatpush1.bf16.msra.mxu0 %v703
        %724 = vmatprep.subr.bf16.mxu0 0
        %725 = vmatpush1.bf16.msra.mxu0 %v704
        %726 = vmatprep.subr.bf16.mxu0 0
        %727 = vmatpush1.bf16.msra.mxu0 %v705
        %728 = vmatprep.subr.bf16.mxu0 0
        %729 = vmatpush1.bf16.msra.mxu0 %v706
        %730 = vmatprep.subr.bf16.mxu0 0
        %731 = vmatpush1.bf16.msra.mxu0 %v707
        %732 = vmatprep.subr.bf16.mxu0 0
        %733 = vmatpush1.bf16.msra.mxu0 0
        %734 = vmatprep.subr.bf16.mxu0 0
        %735 = vmatpush1.bf16.msra.mxu0 0
        %736 = vmatprep.subr.bf16.mxu0 0
        %737 = vmatpush1.bf16.msra.mxu0 0
        %738 = vmatprep.subr.bf16.mxu0 0
        %739 = vmatpush1.bf16.msra.mxu0 0
        %740 = vmatprep.subr.bf16.mxu0 0
        %741 = vmatpush1.bf16.msra.mxu0 0
        %742 = vmatprep.subr.bf16.mxu0 0
        %743 = vmatpush1.bf16.msra.mxu0 0
        %744 = vmatprep.subr.bf16.mxu0 0
        %745 = vmatpush1.bf16.msra.mxu0 0
        %746 = vmatprep.subr.bf16.mxu0 0
        %747 = vmatpush1.bf16.msra.mxu0 0
        %748 = vmatprep.mubr.bf16.mxu0 0
        %749 = vmatmul.mubr.bf16.gmra.mrb[0].mxu0 %v647
        %v750 = vpop.f32.mrb[0].mxu0
        %v751 = vadd.f32 0.0, %v750
        %v752 = vpop.f32.mrb[0].mxu0
        %v753 = vpop.f32.mrb[0].mxu0
        %v754 = vadd.f32 0.0, %v753
        %v755 = vpop.f32.mrb[0].mxu0
        %756 = vmatprep.mubr.bf16.mxu0 0
        %757 = vmatmul.mubr.bf16.gmra.mrb[0].mxu0 %v648
        %v758 = vpop.f32.mrb[0].mxu0
        %v759 = vadd.f32 0.0, %v758
        %v760 = vpop.f32.mrb[0].mxu0
        %v761 = vpop.f32.mrb[0].mxu0
        %v762 = vadd.f32 0.0, %v761
        %v763 = vpop.f32.mrb[0].mxu0
        %764 = vmatprep.mubr.bf16.mxu0 0
        %765 = vmatmul.mubr.bf16.gmra.mrb[0].mxu0 %v649
        %v766 = vpop.f32.mrb[0].mxu0
        %v767 = vadd.f32 0.0, %v766
        %v768 = vpop.f32.mrb[0].mxu0
        %v769 = vpop.f32.mrb[0].mxu0
        %v770 = vadd.f32 0.0, %v769
        %v771 = vpop.f32.mrb[0].mxu0
        %772 = vmatprep.mubr.bf16.mxu0 0
        %773 = vmatmul.mubr.bf16.gmra.mrb[0].mxu0 %v650
        %v774 = vpop.f32.mrb[0].mxu0
        %v775 = vadd.f32 0.0, %v774
        %v776 = vpop.f32.mrb[0].mxu0
        %v777 = vpop.f32.mrb[0].mxu0
        %v778 = vadd.f32 0.0, %v777
        %v779 = vpop.f32.mrb[0].mxu0
        %780 = vdwg.mxu0
        %v781 = vadd.f32 %v609, %v751
        %v782 = vadd.f32 %v612, %v754
        %v783 = vadd.f32 %v617, %v759
        %v784 = vadd.f32 %v620, %v762
        %v785 = vadd.f32 %v625, %v767
        %v786 = vadd.f32 %v628, %v770
        %v787 = vadd.f32 %v633, %v775
        %v788 = vadd.f32 %v636, %v778
        %v789 = vld [vmem:[%s347 + $0x7] sm:$0xff]
        %v790 = vld [vmem:[%s347 + $0x1f] sm:$0xff]
        %v791 = vld [vmem:[%s347 + $0x37] sm:$0xff]
        %v792 = vld [vmem:[%s347 + $0x4f] sm:$0xff]
        %v793 = vld [vmem:[%s347 + $0x67] sm:$0xff]
        %v794 = vld [vmem:[%s347 + $0x7f] sm:$0xff]
        %v795 = vld [vmem:[%s347 + $0x97] sm:$0xff]
        %v796 = vld [vmem:[%s347 + $0xaf] sm:$0xff]
        %v797 = vpack.c.bf16 %v790, %v789
        %v798 = vpack.c.bf16 %v792, %v791
        %v799 = vpack.c.bf16 %v794, %v793
        %v800 = vpack.c.bf16 %v796, %v795
        %s801 = scalar_lea.vmem %s2, 192
        %v802 = vld [vmem:[%s801] sm:$0xf]
        %v803 = vld [vmem:[%s801 + $0x4] sm:$0xf]
        %v804 = vld [vmem:[%s801 + $0x8] sm:$0xf]
        %v805 = vld [vmem:[%s801 + $0xc] sm:$0xf]
        %v806 = vld [vmem:[%s801 + $0x10] sm:$0xf]
        %v807 = vld [vmem:[%s801 + $0x14] sm:$0xf]
        %v808 = vld [vmem:[%s801 + $0x18] sm:$0xf]
        %v809 = vld [vmem:[%s801 + $0x1c] sm:$0xf]
        %v810 = vld [vmem:[%s801 + $0x20] sm:$0xf]
        %v811 = vld [vmem:[%s801 + $0x24] sm:$0xf]
        %v812 = vld [vmem:[%s801 + $0x28] sm:$0xf]
        %v813 = vld [vmem:[%s801 + $0x2c] sm:$0xf]
        %v814 = vld [vmem:[%s801 + $0x30] sm:$0xf]
        %v815 = vld [vmem:[%s801 + $0x34] sm:$0xf]
        %v816 = vld [vmem:[%s801 + $0x38] sm:$0xf]
        %v817 = vld [vmem:[%s801 + $0x3c] sm:$0xf]
        %v834 = vunpack.c.l.b16 %v802
        %v835 = vunpack.c.l.b16 %v803
        %v836 = vunpack.c.l.b16 %v804
        %v837 = vunpack.c.l.b16 %v805
        %v838 = vunpack.c.l.b16 %v806
        %v839 = vunpack.c.l.b16 %v807
        %v840 = vunpack.c.l.b16 %v808
        %v841 = vunpack.c.l.b16 %v809
        %v842 = vunpack.c.l.b16 %v810
        %v843 = vunpack.c.l.b16 %v811
        %v844 = vunpack.c.l.b16 %v812
        %v845 = vunpack.c.l.b16 %v813
        %v846 = vunpack.c.l.b16 %v814
        %v847 = vunpack.c.l.b16 %v815
        %v848 = vunpack.c.l.b16 %v816
        %v849 = vunpack.c.l.b16 %v817
        %v850 = vpack.c.b16 %v835, %v834
        %v851 = vpack.c.b16 %v837, %v836
        %v852 = vpack.c.b16 %v839, %v838
        %v853 = vpack.c.b16 %v841, %v840
        %v854 = vpack.c.b16 %v843, %v842
        %v855 = vpack.c.b16 %v845, %v844
        %v856 = vpack.c.b16 %v847, %v846
        %v857 = vpack.c.b16 %v849, %v848
        %866 = vmatprep.subr.bf16.mxu0 0
        %867 = vmatpush1.bf16.msra.mxu0 %v850
        %868 = vmatprep.subr.bf16.mxu0 0
        %869 = vmatpush1.bf16.msra.mxu0 %v851
        %870 = vmatprep.subr.bf16.mxu0 0
        %871 = vmatpush1.bf16.msra.mxu0 %v852
        %872 = vmatprep.subr.bf16.mxu0 0
        %873 = vmatpush1.bf16.msra.mxu0 %v853
        %874 = vmatprep.subr.bf16.mxu0 0
        %875 = vmatpush1.bf16.msra.mxu0 %v854
        %876 = vmatprep.subr.bf16.mxu0 0
        %877 = vmatpush1.bf16.msra.mxu0 %v855
        %878 = vmatprep.subr.bf16.mxu0 0
        %879 = vmatpush1.bf16.msra.mxu0 %v856
        %880 = vmatprep.subr.bf16.mxu0 0
        %881 = vmatpush1.bf16.msra.mxu0 %v857
        %882 = vmatprep.subr.bf16.mxu0 0
        %883 = vmatpush1.bf16.msra.mxu0 0
        %884 = vmatprep.subr.bf16.mxu0 0
        %885 = vmatpush1.bf16.msra.mxu0 0
        %886 = vmatprep.subr.bf16.mxu0 0
        %887 = vmatpush1.bf16.msra.mxu0 0
        %888 = vmatprep.subr.bf16.mxu0 0
        %889 = vmatpush1.bf16.msra.mxu0 0
        %890 = vmatprep.subr.bf16.mxu0 0
        %891 = vmatpush1.bf16.msra.mxu0 0
        %892 = vmatprep.subr.bf16.mxu0 0
        %893 = vmatpush1.bf16.msra.mxu0 0
        %894 = vmatprep.subr.bf16.mxu0 0
        %895 = vmatpush1.bf16.msra.mxu0 0
        %896 = vmatprep.subr.bf16.mxu0 0
        %897 = vmatpush1.bf16.msra.mxu0 0
        %898 = vmatprep.mubr.bf16.mxu0 0
        %899 = vmatmul.mubr.bf16.gmra.mrb[0].mxu0 %v797
        %v900 = vpop.f32.mrb[0].mxu0
        %v901 = vadd.f32 0.0, %v900
        %v902 = vpop.f32.mrb[0].mxu0
        %v903 = vpop.f32.mrb[0].mxu0
        %v904 = vadd.f32 0.0, %v903
        %v905 = vpop.f32.mrb[0].mxu0
        %906 = vmatprep.mubr.bf16.mxu0 0
        %907 = vmatmul.mubr.bf16.gmra.mrb[0].mxu0 %v798
        %v908 = vpop.f32.mrb[0].mxu0
        %v909 = vadd.f32 0.0, %v908
        %v910 = vpop.f32.mrb[0].mxu0
        %v911 = vpop.f32.mrb[0].mxu0
        %v912 = vadd.f32 0.0, %v911
        %v913 = vpop.f32.mrb[0].mxu0
        %914 = vmatprep.mubr.bf16.mxu0 0
        %915 = vmatmul.mubr.bf16.gmra.mrb[0].mxu0 %v799
        %v916 = vpop.f32.mrb[0].mxu0
        %v917 = vadd.f32 0.0, %v916
        %v918 = vpop.f32.mrb[0].mxu0
        %v919 = vpop.f32.mrb[0].mxu0
        %v920 = vadd.f32 0.0, %v919
        %v921 = vpop.f32.mrb[0].mxu0
        %922 = vmatprep.mubr.bf16.mxu0 0
        %923 = vmatmul.mubr.bf16.gmra.mrb[0].mxu0 %v800
        %v924 = vpop.f32.mrb[0].mxu0
        %v925 = vadd.f32 0.0, %v924
        %v926 = vpop.f32.mrb[0].mxu0
        %v927 = vpop.f32.mrb[0].mxu0
        %v928 = vadd.f32 0.0, %v927
        %v929 = vpop.f32.mrb[0].mxu0
        %930 = vdwg.mxu0
        %v931 = vadd.f32 %v781, %v901
        %v932 = vadd.f32 %v782, %v904
        %v933 = vadd.f32 %v783, %v909
        %v934 = vadd.f32 %v784, %v912
        %v935 = vadd.f32 %v785, %v917
        %v936 = vadd.f32 %v786, %v920
        %v937 = vadd.f32 %v787, %v925
        %v938 = vadd.f32 %v788, %v928
        %v939 = vld [vmem:[%s347 + $0x8] sm:$0xff]
        %v940 = vld [vmem:[%s347 + $0x20] sm:$0xff]
        %v941 = vld [vmem:[%s347 + $0x38] sm:$0xff]
        %v942 = vld [vmem:[%s347 + $0x50] sm:$0xff]
        %v943 = vld [vmem:[%s347 + $0x68] sm:$0xff]
        %v944 = vld [vmem:[%s347 + $0x80] sm:$0xff]
        %v945 = vld [vmem:[%s347 + $0x98] sm:$0xff]
        %v946 = vld [vmem:[%s347 + $0xb0] sm:$0xff]
        %v947 = vpack.c.bf16 %v940, %v939
        %v948 = vpack.c.bf16 %v942, %v941
        %v949 = vpack.c.bf16 %v944, %v943
        %v950 = vpack.c.bf16 %v946, %v945
        %s951 = scalar_lea.vmem %s2, 256
        %v952 = vld [vmem:[%s951] sm:$0xf]
        %v953 = vld [vmem:[%s951 + $0x4] sm:$0xf]
        %v954 = vld [vmem:[%s951 + $0x8] sm:$0xf]
        %v955 = vld [vmem:[%s951 + $0xc] sm:$0xf]
        %v956 = vld [vmem:[%s951 + $0x10] sm:$0xf]
        %v957 = vld [vmem:[%s951 + $0x14] sm:$0xf]
        %v958 = vld [vmem:[%s951 + $0x18] sm:$0xf]
        %v959 = vld [vmem:[%s951 + $0x1c] sm:$0xf]
        %v960 = vld [vmem:[%s951 + $0x20] sm:$0xf]
        %v961 = vld [vmem:[%s951 + $0x24] sm:$0xf]
        %v962 = vld [vmem:[%s951 + $0x28] sm:$0xf]
        %v963 = vld [vmem:[%s951 + $0x2c] sm:$0xf]
        %v964 = vld [vmem:[%s951 + $0x30] sm:$0xf]
        %v965 = vld [vmem:[%s951 + $0x34] sm:$0xf]
        %v966 = vld [vmem:[%s951 + $0x38] sm:$0xf]
        %v967 = vld [vmem:[%s951 + $0x3c] sm:$0xf]
        %v984 = vunpack.c.l.b16 %v952
        %v985 = vunpack.c.l.b16 %v953
        %v986 = vunpack.c.l.b16 %v954
        %v987 = vunpack.c.l.b16 %v955
        %v988 = vunpack.c.l.b16 %v956
        %v989 = vunpack.c.l.b16 %v957
        %v990 = vunpack.c.l.b16 %v958
        %v991 = vunpack.c.l.b16 %v959
        %v992 = vunpack.c.l.b16 %v960
        %v993 = vunpack.c.l.b16 %v961
        %v994 = vunpack.c.l.b16 %v962
        %v995 = vunpack.c.l.b16 %v963
        %v996 = vunpack.c.l.b16 %v964
        %v997 = vunpack.c.l.b16 %v965
        %v998 = vunpack.c.l.b16 %v966
        %v999 = vunpack.c.l.b16 %v967
        %v1000 = vpack.c.b16 %v985, %v984
        %v1001 = vpack.c.b16 %v987, %v986
        %v1002 = vpack.c.b16 %v989, %v988
        %v1003 = vpack.c.b16 %v991, %v990
        %v1004 = vpack.c.b16 %v993, %v992
        %v1005 = vpack.c.b16 %v995, %v994
        %v1006 = vpack.c.b16 %v997, %v996
        %v1007 = vpack.c.b16 %v999, %v998
        %1016 = vmatprep.subr.bf16.mxu0 0
        %1017 = vmatpush1.bf16.msra.mxu0 %v1000
        %1018 = vmatprep.subr.bf16.mxu0 0
        %1019 = vmatpush1.bf16.msra.mxu0 %v1001
        %1020 = vmatprep.subr.bf16.mxu0 0
        %1021 = vmatpush1.bf16.msra.mxu0 %v1002
        %1022 = vmatprep.subr.bf16.mxu0 0
        %1023 = vmatpush1.bf16.msra.mxu0 %v1003
        %1024 = vmatprep.subr.bf16.mxu0 0
        %1025 = vmatpush1.bf16.msra.mxu0 %v1004
        %1026 = vmatprep.subr.bf16.mxu0 0
        %1027 = vmatpush1.bf16.msra.mxu0 %v1005
        %1028 = vmatprep.subr.bf16.mxu0 0
        %1029 = vmatpush1.bf16.msra.mxu0 %v1006
        %1030 = vmatprep.subr.bf16.mxu0 0
        %1031 = vmatpush1.bf16.msra.mxu0 %v1007
        %1032 = vmatprep.subr.bf16.mxu0 0
        %1033 = vmatpush1.bf16.msra.mxu0 0
        %1034 = vmatprep.subr.bf16.mxu0 0
        %1035 = vmatpush1.bf16.msra.mxu0 0
        %1036 = vmatprep.subr.bf16.mxu0 0
        %1037 = vmatpush1.bf16.msra.mxu0 0
        %1038 = vmatprep.subr.bf16.mxu0 0
        %1039 = vmatpush1.bf16.msra.mxu0 0
        %1040 = vmatprep.subr.bf16.mxu0 0
        %1041 = vmatpush1.bf16.msra.mxu0 0
        %1042 = vmatprep.subr.bf16.mxu0 0
        %1043 = vmatpush1.bf16.msra.mxu0 0
        %1044 = vmatprep.subr.bf16.mxu0 0
        %1045 = vmatpush1.bf16.msra.mxu0 0
        %1046 = vmatprep.subr.bf16.mxu0 0
        %1047 = vmatpush1.bf16.msra.mxu0 0
        %1048 = vmatprep.mubr.bf16.mxu0 0
        %1049 = vmatmul.mubr.bf16.gmra.mrb[0].mxu0 %v947
        %v1050 = vpop.f32.mrb[0].mxu0
        %v1051 = vadd.f32 0.0, %v1050
        %v1052 = vpop.f32.mrb[0].mxu0
        %v1053 = vpop.f32.mrb[0].mxu0
        %v1054 = vadd.f32 0.0, %v1053
        %v1055 = vpop.f32.mrb[0].mxu0
        %1056 = vmatprep.mubr.bf16.mxu0 0
        %1057 = vmatmul.mubr.bf16.gmra.mrb[0].mxu0 %v948
        %v1058 = vpop.f32.mrb[0].mxu0
        %v1059 = vadd.f32 0.0, %v1058
        %v1060 = vpop.f32.mrb[0].mxu0
        %v1061 = vpop.f32.mrb[0].mxu0
        %v1062 = vadd.f32 0.0, %v1061
        %v1063 = vpop.f32.mrb[0].mxu0
        %1064 = vmatprep.mubr.bf16.mxu0 0
        %1065 = vmatmul.mubr.bf16.gmra.mrb[0].mxu0 %v949
        %v1066 = vpop.f32.mrb[0].mxu0
        %v1067 = vadd.f32 0.0, %v1066
        %v1068 = vpop.f32.mrb[0].mxu0
        %v1069 = vpop.f32.mrb[0].mxu0
        %v1070 = vadd.f32 0.0, %v1069
        %v1071 = vpop.f32.mrb[0].mxu0
        %1072 = vmatprep.mubr.bf16.mxu0 0
        %1073 = vmatmul.mubr.bf16.gmra.mrb[0].mxu0 %v950
        %v1074 = vpop.f32.mrb[0].mxu0
        %v1075 = vadd.f32 0.0, %v1074
        %v1076 = vpop.f32.mrb[0].mxu0
        %v1077 = vpop.f32.mrb[0].mxu0
        %v1078 = vadd.f32 0.0, %v1077
        %v1079 = vpop.f32.mrb[0].mxu0
        %1080 = vdwg.mxu0
        %v1081 = vadd.f32 %v931, %v1051
        %v1082 = vadd.f32 %v932, %v1054
        %v1083 = vadd.f32 %v933, %v1059
        %v1084 = vadd.f32 %v934, %v1062
        %v1085 = vadd.f32 %v935, %v1067
        %v1086 = vadd.f32 %v936, %v1070
        %v1087 = vadd.f32 %v937, %v1075
        %v1088 = vadd.f32 %v938, %v1078
        %v1089 = vld [vmem:[%s347 + $0x9] sm:$0xff]
        %v1090 = vld [vmem:[%s347 + $0x21] sm:$0xff]
        %v1091 = vld [vmem:[%s347 + $0x39] sm:$0xff]
        %v1092 = vld [vmem:[%s347 + $0x51] sm:$0xff]
        %v1093 = vld [vmem:[%s347 + $0x69] sm:$0xff]
        %v1094 = vld [vmem:[%s347 + $0x81] sm:$0xff]
        %v1095 = vld [vmem:[%s347 + $0x99] sm:$0xff]
        %v1096 = vld [vmem:[%s347 + $0xb1] sm:$0xff]
        %v1097 = vpack.c.bf16 %v1090, %v1089
        %v1098 = vpack.c.bf16 %v1092, %v1091
        %v1099 = vpack.c.bf16 %v1094, %v1093
        %v1100 = vpack.c.bf16 %v1096, %v1095
        %s1101 = scalar_lea.vmem %s2, 320
        %v1102 = vld [vmem:[%s1101] sm:$0xf]
        %v1103 = vld [vmem:[%s1101 + $0x4] sm:$0xf]
        %v1104 = vld [vmem:[%s1101 + $0x8] sm:$0xf]
        %v1105 = vld [vmem:[%s1101 + $0xc] sm:$0xf]
        %v1106 = vld [vmem:[%s1101 + $0x10] sm:$0xf]
        %v1107 = vld [vmem:[%s1101 + $0x14] sm:$0xf]
        %v1108 = vld [vmem:[%s1101 + $0x18] sm:$0xf]
        %v1109 = vld [vmem:[%s1101 + $0x1c] sm:$0xf]
        %v1110 = vld [vmem:[%s1101 + $0x20] sm:$0xf]
        %v1111 = vld [vmem:[%s1101 + $0x24] sm:$0xf]
        %v1112 = vld [vmem:[%s1101 + $0x28] sm:$0xf]
        %v1113 = vld [vmem:[%s1101 + $0x2c] sm:$0xf]
        %v1114 = vld [vmem:[%s1101 + $0x30] sm:$0xf]
        %v1115 = vld [vmem:[%s1101 + $0x34] sm:$0xf]
        %v1116 = vld [vmem:[%s1101 + $0x38] sm:$0xf]
        %v1117 = vld [vmem:[%s1101 + $0x3c] sm:$0xf]
        %v1134 = vunpack.c.l.b16 %v1102
        %v1135 = vunpack.c.l.b16 %v1103
        %v1136 = vunpack.c.l.b16 %v1104
        %v1137 = vunpack.c.l.b16 %v1105
        %v1138 = vunpack.c.l.b16 %v1106
        %v1139 = vunpack.c.l.b16 %v1107
        %v1140 = vunpack.c.l.b16 %v1108
        %v1141 = vunpack.c.l.b16 %v1109
        %v1142 = vunpack.c.l.b16 %v1110
        %v1143 = vunpack.c.l.b16 %v1111
        %v1144 = vunpack.c.l.b16 %v1112
        %v1145 = vunpack.c.l.b16 %v1113
        %v1146 = vunpack.c.l.b16 %v1114
        %v1147 = vunpack.c.l.b16 %v1115
        %v1148 = vunpack.c.l.b16 %v1116
        %v1149 = vunpack.c.l.b16 %v1117
        %v1150 = vpack.c.b16 %v1135, %v1134
        %v1151 = vpack.c.b16 %v1137, %v1136
        %v1152 = vpack.c.b16 %v1139, %v1138
        %v1153 = vpack.c.b16 %v1141, %v1140
        %v1154 = vpack.c.b16 %v1143, %v1142
        %v1155 = vpack.c.b16 %v1145, %v1144
        %v1156 = vpack.c.b16 %v1147, %v1146
        %v1157 = vpack.c.b16 %v1149, %v1148
        %1166 = vmatprep.subr.bf16.mxu0 0
        %1167 = vmatpush1.bf16.msra.mxu0 %v1150
        %1168 = vmatprep.subr.bf16.mxu0 0
        %1169 = vmatpush1.bf16.msra.mxu0 %v1151
        %1170 = vmatprep.subr.bf16.mxu0 0
        %1171 = vmatpush1.bf16.msra.mxu0 %v1152
        %1172 = vmatprep.subr.bf16.mxu0 0
        %1173 = vmatpush1.bf16.msra.mxu0 %v1153
        %1174 = vmatprep.subr.bf16.mxu0 0
        %1175 = vmatpush1.bf16.msra.mxu0 %v1154
        %1176 = vmatprep.subr.bf16.mxu0 0
        %1177 = vmatpush1.bf16.msra.mxu0 %v1155
        %1178 = vmatprep.subr.bf16.mxu0 0
        %1179 = vmatpush1.bf16.msra.mxu0 %v1156
        %1180 = vmatprep.subr.bf16.mxu0 0
        %1181 = vmatpush1.bf16.msra.mxu0 %v1157
        %1182 = vmatprep.subr.bf16.mxu0 0
        %1183 = vmatpush1.bf16.msra.mxu0 0
        %1184 = vmatprep.subr.bf16.mxu0 0
        %1185 = vmatpush1.bf16.msra.mxu0 0
        %1186 = vmatprep.subr.bf16.mxu0 0
        %1187 = vmatpush1.bf16.msra.mxu0 0
        %1188 = vmatprep.subr.bf16.mxu0 0
        %1189 = vmatpush1.bf16.msra.mxu0 0
        %1190 = vmatprep.subr.bf16.mxu0 0
        %1191 = vmatpush1.bf16.msra.mxu0 0
        %1192 = vmatprep.subr.bf16.mxu0 0
        %1193 = vmatpush1.bf16.msra.mxu0 0
        %1194 = vmatprep.subr.bf16.mxu0 0
        %1195 = vmatpush1.bf16.msra.mxu0 0
        %1196 = vmatprep.subr.bf16.mxu0 0
        %1197 = vmatpush1.bf16.msra.mxu0 0
        %1198 = vmatprep.mubr.bf16.mxu0 0
        %1199 = vmatmul.mubr.bf16.gmra.mrb[0].mxu0 %v1097
        %v1200 = vpop.f32.mrb[0].mxu0
        %v1201 = vadd.f32 0.0, %v1200
        %v1202 = vpop.f32.mrb[0].mxu0
        %v1203 = vpop.f32.mrb[0].mxu0
        %v1204 = vadd.f32 0.0, %v1203
        %v1205 = vpop.f32.mrb[0].mxu0
        %1206 = vmatprep.mubr.bf16.mxu0 0
        %1207 = vmatmul.mubr.bf16.gmra.mrb[0].mxu0 %v1098
        %v1208 = vpop.f32.mrb[0].mxu0
        %v1209 = vadd.f32 0.0, %v1208
        %v1210 = vpop.f32.mrb[0].mxu0
        %v1211 = vpop.f32.mrb[0].mxu0
        %v1212 = vadd.f32 0.0, %v1211
        %v1213 = vpop.f32.mrb[0].mxu0
        %1214 = vmatprep.mubr.bf16.mxu0 0
        %1215 = vmatmul.mubr.bf16.gmra.mrb[0].mxu0 %v1099
        %v1216 = vpop.f32.mrb[0].mxu0
        %v1217 = vadd.f32 0.0, %v1216
        %v1218 = vpop.f32.mrb[0].mxu0
        %v1219 = vpop.f32.mrb[0].mxu0
        %v1220 = vadd.f32 0.0, %v1219
        %v1221 = vpop.f32.mrb[0].mxu0
        %1222 = vmatprep.mubr.bf16.mxu0 0
        %1223 = vmatmul.mubr.bf16.gmra.mrb[0].mxu0 %v1100
        %v1224 = vpop.f32.mrb[0].mxu0
        %v1225 = vadd.f32 0.0, %v1224
        %v1226 = vpop.f32.mrb[0].mxu0
        %v1227 = vpop.f32.mrb[0].mxu0
        %v1228 = vadd.f32 0.0, %v1227
        %v1229 = vpop.f32.mrb[0].mxu0
        %1230 = vdwg.mxu0
        %v1231 = vadd.f32 %v1081, %v1201
        %v1232 = vadd.f32 %v1082, %v1204
        %v1233 = vadd.f32 %v1083, %v1209
        %v1234 = vadd.f32 %v1084, %v1212
        %v1235 = vadd.f32 %v1085, %v1217
        %v1236 = vadd.f32 %v1086, %v1220
        %v1237 = vadd.f32 %v1087, %v1225
        %v1238 = vadd.f32 %v1088, %v1228
        %s1239 = scalar_lea.vmem [#allocation2], 48
        %v1240 = vld [vmem:[%s1239 + $0x7] sm:$0xff]
        %v1241 = vld [vmem:[%s1239 + $0x1f] sm:$0xff]
        %v1242 = vld [vmem:[%s1239 + $0x37] sm:$0xff]
        %v1243 = vld [vmem:[%s1239 + $0x4f] sm:$0xff]
        %v1244 = vld [vmem:[%s1239 + $0x67] sm:$0xff]
        %v1245 = vld [vmem:[%s1239 + $0x7f] sm:$0xff]
        %v1246 = vld [vmem:[%s1239 + $0x97] sm:$0xff]
        %v1247 = vld [vmem:[%s1239 + $0xaf] sm:$0xff]
        %v1248 = vpack.c.bf16 %v1241, %v1240
        %v1249 = vpack.c.bf16 %v1243, %v1242
        %v1250 = vpack.c.bf16 %v1245, %v1244
        %v1251 = vpack.c.bf16 %v1247, %v1246
        %s1252 = scalar_lea.vmem %s2, 384
        %v1253 = vld [vmem:[%s1252] sm:$0xf]
        %v1254 = vld [vmem:[%s1252 + $0x4] sm:$0xf]
        %v1255 = vld [vmem:[%s1252 + $0x8] sm:$0xf]
        %v1256 = vld [vmem:[%s1252 + $0xc] sm:$0xf]
        %v1257 = vld [vmem:[%s1252 + $0x10] sm:$0xf]
        %v1258 = vld [vmem:[%s1252 + $0x14] sm:$0xf]
        %v1259 = vld [vmem:[%s1252 + $0x18] sm:$0xf]
        %v1260 = vld [vmem:[%s1252 + $0x1c] sm:$0xf]
        %v1261 = vld [vmem:[%s1252 + $0x20] sm:$0xf]
        %v1262 = vld [vmem:[%s1252 + $0x24] sm:$0xf]
        %v1263 = vld [vmem:[%s1252 + $0x28] sm:$0xf]
        %v1264 = vld [vmem:[%s1252 + $0x2c] sm:$0xf]
        %v1265 = vld [vmem:[%s1252 + $0x30] sm:$0xf]
        %v1266 = vld [vmem:[%s1252 + $0x34] sm:$0xf]
        %v1267 = vld [vmem:[%s1252 + $0x38] sm:$0xf]
        %v1268 = vld [vmem:[%s1252 + $0x3c] sm:$0xf]
        %v1285 = vunpack.c.l.b16 %v1253
        %v1286 = vunpack.c.l.b16 %v1254
        %v1287 = vunpack.c.l.b16 %v1255
        %v1288 = vunpack.c.l.b16 %v1256
        %v1289 = vunpack.c.l.b16 %v1257
        %v1290 = vunpack.c.l.b16 %v1258
        %v1291 = vunpack.c.l.b16 %v1259
        %v1292 = vunpack.c.l.b16 %v1260
        %v1293 = vunpack.c.l.b16 %v1261
        %v1294 = vunpack.c.l.b16 %v1262
        %v1295 = vunpack.c.l.b16 %v1263
        %v1296 = vunpack.c.l.b16 %v1264
        %v1297 = vunpack.c.l.b16 %v1265
        %v1298 = vunpack.c.l.b16 %v1266
        %v1299 = vunpack.c.l.b16 %v1267
        %v1300 = vunpack.c.l.b16 %v1268
        %v1301 = vpack.c.b16 %v1286, %v1285
        %v1302 = vpack.c.b16 %v1288, %v1287
        %v1303 = vpack.c.b16 %v1290, %v1289
        %v1304 = vpack.c.b16 %v1292, %v1291
        %v1305 = vpack.c.b16 %v1294, %v1293
        %v1306 = vpack.c.b16 %v1296, %v1295
        %v1307 = vpack.c.b16 %v1298, %v1297
        %v1308 = vpack.c.b16 %v1300, %v1299
        %1317 = vmatprep.subr.bf16.mxu0 0
        %1318 = vmatpush1.bf16.msra.mxu0 %v1301
        %1319 = vmatprep.subr.bf16.mxu0 0
        %1320 = vmatpush1.bf16.msra.mxu0 %v1302
        %1321 = vmatprep.subr.bf16.mxu0 0
        %1322 = vmatpush1.bf16.msra.mxu0 %v1303
        %1323 = vmatprep.subr.bf16.mxu0 0
        %1324 = vmatpush1.bf16.msra.mxu0 %v1304
        %1325 = vmatprep.subr.bf16.mxu0 0
        %1326 = vmatpush1.bf16.msra.mxu0 %v1305
        %1327 = vmatprep.subr.bf16.mxu0 0
        %1328 = vmatpush1.bf16.msra.mxu0 %v1306
        %1329 = vmatprep.subr.bf16.mxu0 0
        %1330 = vmatpush1.bf16.msra.mxu0 %v1307
        %1331 = vmatprep.subr.bf16.mxu0 0
        %1332 = vmatpush1.bf16.msra.mxu0 %v1308
        %1333 = vmatprep.subr.bf16.mxu0 0
        %1334 = vmatpush1.bf16.msra.mxu0 0
        %1335 = vmatprep.subr.bf16.mxu0 0
        %1336 = vmatpush1.bf16.msra.mxu0 0
        %1337 = vmatprep.subr.bf16.mxu0 0
        %1338 = vmatpush1.bf16.msra.mxu0 0
        %1339 = vmatprep.subr.bf16.mxu0 0
        %1340 = vmatpush1.bf16.msra.mxu0 0
        %1341 = vmatprep.subr.bf16.mxu0 0
        %1342 = vmatpush1.bf16.msra.mxu0 0
        %1343 = vmatprep.subr.bf16.mxu0 0
        %1344 = vmatpush1.bf16.msra.mxu0 0
        %1345 = vmatprep.subr.bf16.mxu0 0
        %1346 = vmatpush1.bf16.msra.mxu0 0
        %1347 = vmatprep.subr.bf16.mxu0 0
        %1348 = vmatpush1.bf16.msra.mxu0 0
        %1349 = vmatprep.mubr.bf16.mxu0 0
        %1350 = vmatmul.mubr.bf16.gmra.mrb[0].mxu0 %v1248
        %v1351 = vpop.f32.mrb[0].mxu0
        %v1352 = vadd.f32 0.0, %v1351
        %v1353 = vpop.f32.mrb[0].mxu0
        %v1354 = vpop.f32.mrb[0].mxu0
        %v1355 = vadd.f32 0.0, %v1354
        %v1356 = vpop.f32.mrb[0].mxu0
        %1357 = vmatprep.mubr.bf16.mxu0 0
        %1358 = vmatmul.mubr.bf16.gmra.mrb[0].mxu0 %v1249
        %v1359 = vpop.f32.mrb[0].mxu0
        %v1360 = vadd.f32 0.0, %v1359
        %v1361 = vpop.f32.mrb[0].mxu0
        %v1362 = vpop.f32.mrb[0].mxu0
        %v1363 = vadd.f32 0.0, %v1362
        %v1364 = vpop.f32.mrb[0].mxu0
        %1365 = vmatprep.mubr.bf16.mxu0 0
        %1366 = vmatmul.mubr.bf16.gmra.mrb[0].mxu0 %v1250
        %v1367 = vpop.f32.mrb[0].mxu0
        %v1368 = vadd.f32 0.0, %v1367
        %v1369 = vpop.f32.mrb[0].mxu0
        %v1370 = vpop.f32.mrb[0].mxu0
        %v1371 = vadd.f32 0.0, %v1370
        %v1372 = vpop.f32.mrb[0].mxu0
        %1373 = vmatprep.mubr.bf16.mxu0 0
        %1374 = vmatmul.mubr.bf16.gmra.mrb[0].mxu0 %v1251
        %v1375 = vpop.f32.mrb[0].mxu0
        %v1376 = vadd.f32 0.0, %v1375
        %v1377 = vpop.f32.mrb[0].mxu0
        %v1378 = vpop.f32.mrb[0].mxu0
        %v1379 = vadd.f32 0.0, %v1378
        %v1380 = vpop.f32.mrb[0].mxu0
        %1381 = vdwg.mxu0
        %v1382 = vadd.f32 %v1231, %v1352
        %v1383 = vadd.f32 %v1232, %v1355
        %v1384 = vadd.f32 %v1233, %v1360
        %v1385 = vadd.f32 %v1234, %v1363
        %v1386 = vadd.f32 %v1235, %v1368
        %v1387 = vadd.f32 %v1236, %v1371
        %v1388 = vadd.f32 %v1237, %v1376
        %v1389 = vadd.f32 %v1238, %v1379
        %v1390 = vld [vmem:[%s1239 + $0x8] sm:$0xff]
        %v1391 = vld [vmem:[%s1239 + $0x20] sm:$0xff]
        %v1392 = vld [vmem:[%s1239 + $0x38] sm:$0xff]
        %v1393 = vld [vmem:[%s1239 + $0x50] sm:$0xff]
        %v1394 = vld [vmem:[%s1239 + $0x68] sm:$0xff]
        %v1395 = vld [vmem:[%s1239 + $0x80] sm:$0xff]
        %v1396 = vld [vmem:[%s1239 + $0x98] sm:$0xff]
        %v1397 = vld [vmem:[%s1239 + $0xb0] sm:$0xff]
        %v1398 = vpack.c.bf16 %v1391, %v1390
        %v1399 = vpack.c.bf16 %v1393, %v1392
        %v1400 = vpack.c.bf16 %v1395, %v1394
        %v1401 = vpack.c.bf16 %v1397, %v1396
        %s1402 = scalar_lea.vmem %s2, 448
        %v1403 = vld [vmem:[%s1402] sm:$0xf]
        %v1404 = vld [vmem:[%s1402 + $0x4] sm:$0xf]
        %v1405 = vld [vmem:[%s1402 + $0x8] sm:$0xf]
        %v1406 = vld [vmem:[%s1402 + $0xc] sm:$0xf]
        %v1407 = vld [vmem:[%s1402 + $0x10] sm:$0xf]
        %v1408 = vld [vmem:[%s1402 + $0x14] sm:$0xf]
        %v1409 = vld [vmem:[%s1402 + $0x18] sm:$0xf]
        %v1410 = vld [vmem:[%s1402 + $0x1c] sm:$0xf]
        %v1411 = vld [vmem:[%s1402 + $0x20] sm:$0xf]
        %v1412 = vld [vmem:[%s1402 + $0x24] sm:$0xf]
        %v1413 = vld [vmem:[%s1402 + $0x28] sm:$0xf]
        %v1414 = vld [vmem:[%s1402 + $0x2c] sm:$0xf]
        %v1415 = vld [vmem:[%s1402 + $0x30] sm:$0xf]
        %v1416 = vld [vmem:[%s1402 + $0x34] sm:$0xf]
        %v1417 = vld [vmem:[%s1402 + $0x38] sm:$0xf]
        %v1418 = vld [vmem:[%s1402 + $0x3c] sm:$0xf]
        %v1435 = vunpack.c.l.b16 %v1403
        %v1436 = vunpack.c.l.b16 %v1404
        %v1437 = vunpack.c.l.b16 %v1405
        %v1438 = vunpack.c.l.b16 %v1406
        %v1439 = vunpack.c.l.b16 %v1407
        %v1440 = vunpack.c.l.b16 %v1408
        %v1441 = vunpack.c.l.b16 %v1409
        %v1442 = vunpack.c.l.b16 %v1410
        %v1443 = vunpack.c.l.b16 %v1411
        %v1444 = vunpack.c.l.b16 %v1412
        %v1445 = vunpack.c.l.b16 %v1413
        %v1446 = vunpack.c.l.b16 %v1414
        %v1447 = vunpack.c.l.b16 %v1415
        %v1448 = vunpack.c.l.b16 %v1416
        %v1449 = vunpack.c.l.b16 %v1417
        %v1450 = vunpack.c.l.b16 %v1418
        %v1451 = vpack.c.b16 %v1436, %v1435
        %v1452 = vpack.c.b16 %v1438, %v1437
        %v1453 = vpack.c.b16 %v1440, %v1439
        %v1454 = vpack.c.b16 %v1442, %v1441
        %v1455 = vpack.c.b16 %v1444, %v1443
        %v1456 = vpack.c.b16 %v1446, %v1445
        %v1457 = vpack.c.b16 %v1448, %v1447
        %v1458 = vpack.c.b16 %v1450, %v1449
        %1467 = vmatprep.subr.bf16.mxu0 0
        %1468 = vmatpush1.bf16.msra.mxu0 %v1451
        %1469 = vmatprep.subr.bf16.mxu0 0
        %1470 = vmatpush1.bf16.msra.mxu0 %v1452
        %1471 = vmatprep.subr.bf16.mxu0 0
        %1472 = vmatpush1.bf16.msra.mxu0 %v1453
        %1473 = vmatprep.subr.bf16.mxu0 0
        %1474 = vmatpush1.bf16.msra.mxu0 %v1454
        %1475 = vmatprep.subr.bf16.mxu0 0
        %1476 = vmatpush1.bf16.msra.mxu0 %v1455
        %1477 = vmatprep.subr.bf16.mxu0 0
        %1478 = vmatpush1.bf16.msra.mxu0 %v1456
        %1479 = vmatprep.subr.bf16.mxu0 0
        %1480 = vmatpush1.bf16.msra.mxu0 %v1457
        %1481 = vmatprep.subr.bf16.mxu0 0
        %1482 = vmatpush1.bf16.msra.mxu0 %v1458
        %1483 = vmatprep.subr.bf16.mxu0 0
        %1484 = vmatpush1.bf16.msra.mxu0 0
        %1485 = vmatprep.subr.bf16.mxu0 0
        %1486 = vmatpush1.bf16.msra.mxu0 0
        %1487 = vmatprep.subr.bf16.mxu0 0
        %1488 = vmatpush1.bf16.msra.mxu0 0
        %1489 = vmatprep.subr.bf16.mxu0 0
        %1490 = vmatpush1.bf16.msra.mxu0 0
        %1491 = vmatprep.subr.bf16.mxu0 0
        %1492 = vmatpush1.bf16.msra.mxu0 0
        %1493 = vmatprep.subr.bf16.mxu0 0
        %1494 = vmatpush1.bf16.msra.mxu0 0
        %1495 = vmatprep.subr.bf16.mxu0 0
        %1496 = vmatpush1.bf16.msra.mxu0 0
        %1497 = vmatprep.subr.bf16.mxu0 0
        %1498 = vmatpush1.bf16.msra.mxu0 0
        %1499 = vmatprep.mubr.bf16.mxu0 0
        %1500 = vmatmul.mubr.bf16.gmra.mrb[0].mxu0 %v1398
        %v1501 = vpop.f32.mrb[0].mxu0
        %v1502 = vadd.f32 0.0, %v1501
        %v1503 = vpop.f32.mrb[0].mxu0
        %v1504 = vpop.f32.mrb[0].mxu0
        %v1505 = vadd.f32 0.0, %v1504
        %v1506 = vpop.f32.mrb[0].mxu0
        %1507 = vmatprep.mubr.bf16.mxu0 0
        %1508 = vmatmul.mubr.bf16.gmra.mrb[0].mxu0 %v1399
        %v1509 = vpop.f32.mrb[0].mxu0
        %v1510 = vadd.f32 0.0, %v1509
        %v1511 = vpop.f32.mrb[0].mxu0
        %v1512 = vpop.f32.mrb[0].mxu0
        %v1513 = vadd.f32 0.0, %v1512
        %v1514 = vpop.f32.mrb[0].mxu0
        %1515 = vmatprep.mubr.bf16.mxu0 0
        %1516 = vmatmul.mubr.bf16.gmra.mrb[0].mxu0 %v1400
        %v1517 = vpop.f32.mrb[0].mxu0
        %v1518 = vadd.f32 0.0, %v1517
        %v1519 = vpop.f32.mrb[0].mxu0
        %v1520 = vpop.f32.mrb[0].mxu0
        %v1521 = vadd.f32 0.0, %v1520
        %v1522 = vpop.f32.mrb[0].mxu0
        %1523 = vmatprep.mubr.bf16.mxu0 0
        %1524 = vmatmul.mubr.bf16.gmra.mrb[0].mxu0 %v1401
        %v1525 = vpop.f32.mrb[0].mxu0
        %v1526 = vadd.f32 0.0, %v1525
        %v1527 = vpop.f32.mrb[0].mxu0
        %v1528 = vpop.f32.mrb[0].mxu0
        %v1529 = vadd.f32 0.0, %v1528
        %v1530 = vpop.f32.mrb[0].mxu0
        %1531 = vdwg.mxu0
        %v1532 = vadd.f32 %v1382, %v1502
        %v1533 = vadd.f32 %v1383, %v1505
        %v1534 = vadd.f32 %v1384, %v1510
        %v1535 = vadd.f32 %v1385, %v1513
        %v1536 = vadd.f32 %v1386, %v1518
        %v1537 = vadd.f32 %v1387, %v1521
        %v1538 = vadd.f32 %v1388, %v1526
        %v1539 = vadd.f32 %v1389, %v1529
        %v1540 = vld [vmem:[%s1239 + $0x9] sm:$0xff]
        %v1541 = vld [vmem:[%s1239 + $0x21] sm:$0xff]
        %v1542 = vld [vmem:[%s1239 + $0x39] sm:$0xff]
        %v1543 = vld [vmem:[%s1239 + $0x51] sm:$0xff]
        %v1544 = vld [vmem:[%s1239 + $0x69] sm:$0xff]
        %v1545 = vld [vmem:[%s1239 + $0x81] sm:$0xff]
        %v1546 = vld [vmem:[%s1239 + $0x99] sm:$0xff]
        %v1547 = vld [vmem:[%s1239 + $0xb1] sm:$0xff]
        %v1548 = vpack.c.bf16 %v1541, %v1540
        %v1549 = vpack.c.bf16 %v1543, %v1542
        %v1550 = vpack.c.bf16 %v1545, %v1544
        %v1551 = vpack.c.bf16 %v1547, %v1546
        %s1552 = scalar_lea.vmem %s2, 512
        %v1553 = vld [vmem:[%s1552] sm:$0xf]
        %v1554 = vld [vmem:[%s1552 + $0x4] sm:$0xf]
        %v1555 = vld [vmem:[%s1552 + $0x8] sm:$0xf]
        %v1556 = vld [vmem:[%s1552 + $0xc] sm:$0xf]
        %v1557 = vld [vmem:[%s1552 + $0x10] sm:$0xf]
        %v1558 = vld [vmem:[%s1552 + $0x14] sm:$0xf]
        %v1559 = vld [vmem:[%s1552 + $0x18] sm:$0xf]
        %v1560 = vld [vmem:[%s1552 + $0x1c] sm:$0xf]
        %v1561 = vld [vmem:[%s1552 + $0x20] sm:$0xf]
        %v1562 = vld [vmem:[%s1552 + $0x24] sm:$0xf]
        %v1563 = vld [vmem:[%s1552 + $0x28] sm:$0xf]
        %v1564 = vld [vmem:[%s1552 + $0x2c] sm:$0xf]
        %v1565 = vld [vmem:[%s1552 + $0x30] sm:$0xf]
        %v1566 = vld [vmem:[%s1552 + $0x34] sm:$0xf]
        %v1567 = vld [vmem:[%s1552 + $0x38] sm:$0xf]
        %v1568 = vld [vmem:[%s1552 + $0x3c] sm:$0xf]
        %v1585 = vunpack.c.l.b16 %v1553
        %v1586 = vunpack.c.l.b16 %v1554
        %v1587 = vunpack.c.l.b16 %v1555
        %v1588 = vunpack.c.l.b16 %v1556
        %v1589 = vunpack.c.l.b16 %v1557
        %v1590 = vunpack.c.l.b16 %v1558
        %v1591 = vunpack.c.l.b16 %v1559
        %v1592 = vunpack.c.l.b16 %v1560
        %v1593 = vunpack.c.l.b16 %v1561
        %v1594 = vunpack.c.l.b16 %v1562
        %v1595 = vunpack.c.l.b16 %v1563
        %v1596 = vunpack.c.l.b16 %v1564
        %v1597 = vunpack.c.l.b16 %v1565
        %v1598 = vunpack.c.l.b16 %v1566
        %v1599 = vunpack.c.l.b16 %v1567
        %v1600 = vunpack.c.l.b16 %v1568
        %v1601 = vpack.c.b16 %v1586, %v1585
        %v1602 = vpack.c.b16 %v1588, %v1587
        %v1603 = vpack.c.b16 %v1590, %v1589
        %v1604 = vpack.c.b16 %v1592, %v1591
        %v1605 = vpack.c.b16 %v1594, %v1593
        %v1606 = vpack.c.b16 %v1596, %v1595
        %v1607 = vpack.c.b16 %v1598, %v1597
        %v1608 = vpack.c.b16 %v1600, %v1599
        %1617 = vmatprep.subr.bf16.mxu0 0
        %1618 = vmatpush1.bf16.msra.mxu0 %v1601
        %1619 = vmatprep.subr.bf16.mxu0 0
        %1620 = vmatpush1.bf16.msra.mxu0 %v1602
        %1621 = vmatprep.subr.bf16.mxu0 0
        %1622 = vmatpush1.bf16.msra.mxu0 %v1603
        %1623 = vmatprep.subr.bf16.mxu0 0
        %1624 = vmatpush1.bf16.msra.mxu0 %v1604
        %1625 = vmatprep.subr.bf16.mxu0 0
        %1626 = vmatpush1.bf16.msra.mxu0 %v1605
        %1627 = vmatprep.subr.bf16.mxu0 0
        %1628 = vmatpush1.bf16.msra.mxu0 %v1606
        %1629 = vmatprep.subr.bf16.mxu0 0
        %1630 = vmatpush1.bf16.msra.mxu0 %v1607
        %1631 = vmatprep.subr.bf16.mxu0 0
        %1632 = vmatpush1.bf16.msra.mxu0 %v1608
        %1633 = vmatprep.subr.bf16.mxu0 0
        %1634 = vmatpush1.bf16.msra.mxu0 0
        %1635 = vmatprep.subr.bf16.mxu0 0
        %1636 = vmatpush1.bf16.msra.mxu0 0
        %1637 = vmatprep.subr.bf16.mxu0 0
        %1638 = vmatpush1.bf16.msra.mxu0 0
        %1639 = vmatprep.subr.bf16.mxu0 0
        %1640 = vmatpush1.bf16.msra.mxu0 0
        %1641 = vmatprep.subr.bf16.mxu0 0
        %1642 = vmatpush1.bf16.msra.mxu0 0
        %1643 = vmatprep.subr.bf16.mxu0 0
        %1644 = vmatpush1.bf16.msra.mxu0 0
        %1645 = vmatprep.subr.bf16.mxu0 0
        %1646 = vmatpush1.bf16.msra.mxu0 0
        %1647 = vmatprep.subr.bf16.mxu0 0
        %1648 = vmatpush1.bf16.msra.mxu0 0
        %1649 = vmatprep.mubr.bf16.mxu0 0
        %1650 = vmatmul.mubr.bf16.gmra.mrb[0].mxu0 %v1548
        %v1651 = vpop.f32.mrb[0].mxu0
        %v1652 = vadd.f32 0.0, %v1651
        %v1653 = vpop.f32.mrb[0].mxu0
        %v1654 = vpop.f32.mrb[0].mxu0
        %v1655 = vadd.f32 0.0, %v1654
        %v1656 = vpop.f32.mrb[0].mxu0
        %1657 = vmatprep.mubr.bf16.mxu0 0
        %1658 = vmatmul.mubr.bf16.gmra.mrb[0].mxu0 %v1549
        %v1659 = vpop.f32.mrb[0].mxu0
        %v1660 = vadd.f32 0.0, %v1659
        %v1661 = vpop.f32.mrb[0].mxu0
        %v1662 = vpop.f32.mrb[0].mxu0
        %v1663 = vadd.f32 0.0, %v1662
        %v1664 = vpop.f32.mrb[0].mxu0
        %1665 = vmatprep.mubr.bf16.mxu0 0
        %1666 = vmatmul.mubr.bf16.gmra.mrb[0].mxu0 %v1550
        %v1667 = vpop.f32.mrb[0].mxu0
        %v1668 = vadd.f32 0.0, %v1667
        %v1669 = vpop.f32.mrb[0].mxu0
        %v1670 = vpop.f32.mrb[0].mxu0
        %v1671 = vadd.f32 0.0, %v1670
        %v1672 = vpop.f32.mrb[0].mxu0
        %1673 = vmatprep.mubr.bf16.mxu0 0
        %1674 = vmatmul.mubr.bf16.gmra.mrb[0].mxu0 %v1551
        %v1675 = vpop.f32.mrb[0].mxu0
        %v1676 = vadd.f32 0.0, %v1675
        %v1677 = vpop.f32.mrb[0].mxu0
        %v1678 = vpop.f32.mrb[0].mxu0
        %v1679 = vadd.f32 0.0, %v1678
        %v1680 = vpop.f32.mrb[0].mxu0
        %1681 = vdwg.mxu0
        %v1682 = vadd.f32 %v1532, %v1652
        %v1683 = vadd.f32 %v1533, %v1655
        %v1684 = vadd.f32 %v1534, %v1660
        %v1685 = vadd.f32 %v1535, %v1663
        %v1686 = vadd.f32 %v1536, %v1668
        %v1687 = vadd.f32 %v1537, %v1671
        %v1688 = vadd.f32 %v1538, %v1676
        %v1689 = vadd.f32 %v1539, %v1679
        %1690 = vst [vmem:[%s269] sm:$0xff] %v1682
        %1691 = vst [vmem:[%s269 + $0x8] sm:$0xff] %v1683
        %1692 = vst [vmem:[%s269 + $0x10] sm:$0xff] %v1684
        %1693 = vst [vmem:[%s269 + $0x18] sm:$0xff] %v1685
        %1694 = vst [vmem:[%s269 + $0x20] sm:$0xff] %v1686
        %1695 = vst [vmem:[%s269 + $0x28] sm:$0xff] %v1687
        %1696 = vst [vmem:[%s269 + $0x30] sm:$0xff] %v1688
        %1697 = vst [vmem:[%s269 + $0x38] sm:$0xff] %v1689
        %v1698 = vadd.f32 %v1682, %v1683
        %v1699 = vadd.f32 %v1698, %v1684
        %v1700 = vadd.f32 %v1699, %v1685
        %v1701 = vadd.f32 %v1700, %v1686
        %v1702 = vadd.f32 %v1701, %v1687
        %v1703 = vadd.f32 %v1702, %v1688
        %v1704 = vadd.f32 %v1703, %v1689
        %v1705 = vrot.slane %v1704, 4
        %v1706 = vadd.f32 %v1704, %v1705
        %v1707 = vrot.slane %v1706, 2
        %v1708 = vadd.f32 %v1706, %v1707
        %v1709 = vrot.slane %v1708, 1
        %v1710 = vadd.f32 %v1708, %v1709
        %v1711 = vmul.f32 %v1682, %v1682
        %v1712 = vmul.f32 %v1683, %v1683
        %v1713 = vmul.f32 %v1684, %v1684
        %v1714 = vmul.f32 %v1685, %v1685
        %v1715 = vmul.f32 %v1686, %v1686
        %v1716 = vmul.f32 %v1687, %v1687
        %v1717 = vmul.f32 %v1688, %v1688
        %v1718 = vmul.f32 %v1689, %v1689
        %v1719 = vadd.f32 %v1711, %v1712
        %v1720 = vadd.f32 %v1719, %v1713
        %v1721 = vadd.f32 %v1720, %v1714
        %v1722 = vadd.f32 %v1721, %v1715
        %v1723 = vadd.f32 %v1722, %v1716
        %v1724 = vadd.f32 %v1723, %v1717
        %v1725 = vadd.f32 %v1724, %v1718
        %v1726 = vrot.slane %v1725, 4
        %v1727 = vadd.f32 %v1725, %v1726
        %v1728 = vrot.slane %v1727, 2
        %v1729 = vadd.f32 %v1727, %v1728
        %v1730 = vrot.slane %v1729, 1
        %v1731 = vadd.f32 %v1729, %v1730
        %vm1732 = vcmask 1040384
        %v1733 = vsel %vm1732, %v1710, %v1731
        %1734 = vst [vmem:[%s273] sm:$0x3] %v1733
        %p1735 = scmp.lt.s32.totalorder %s16, 1
        %s1736 = scalar_select %p1735, %s16, 1
        %s1737 = smul.addr %s1736, 8
        %s1738 = smul.addr %s1737, 8
        %s1739 = scalar_lea.vmem %s3, %s1738
        %p1740 = scmp.lt.s32.totalorder %s16, 1
        %s1741 = scalar_select %p1740, %s16, 1
        %s1742 = smul.addr %s1741, 2
        %s1743 = scalar_lea.vmem %s4, %s1742
        // Predicated region
        $region71: #{down_block_forward.4} parent=65 // pred_check
          %p1744 = pneg %p102
        $region72: #{down_block_forward.4} parent=65 // pred_check_branch
          %1746 = sbr.rel (%p1744) target = $region74
        $region73: #{down_block_forward.4} parent=65 // pred_region
          _
        $region74: #{down_block_forward.4} parent=65 // pred_fallthru
          _
        // Predicated region
        $region75: #{down_block_forward.4} parent=65 // pred_check
          %p1747 = pneg %p128
        $region76: #{down_block_forward.4} parent=65 // pred_check_branch
          %1749 = sbr.rel (%p1747) target = $region78
        $region77: #{down_block_forward.4} parent=65 // pred_region
          _
        $region78: #{down_block_forward.4} parent=65 // pred_fallthru
          _
      $region66: #{down_block_forward.4} parent=5 // pred_fallthru
        _
      %p1750 = scmp.le.s32.totalorder 2, %s11
      // Predicated region
      $region79: #{down_block_forward.4} parent=5 // pred_check
        %p1751 = pneg %p1750
      $region80: #{down_block_forward.4} parent=5 // pred_check_branch
        %1753 = sbr.rel (%p1751) target = $region82
      $region81: #{down_block_forward.4} parent=5 // pred_region
        %s1754 = ssub.s32 %s11, 2
        // Predicated region
        $region83: #{down_block_forward.4} parent=81 // pred_check
          %p1755 = pneg %p108
        $region84: #{down_block_forward.4} parent=81 // pred_check_branch
          %1757 = sbr.rel (%p1755) target = $region86
        $region85: #{down_block_forward.4} parent=81 // pred_region
          %p1758 = scmp.lt.s32.totalorder %s17, 1
          %s1759 = scalar_select %p1758, %s17, 1
          %s1760 = smul.addr %s1759, 8
          %s1761 = smul.addr %s1760, 8
          %s1762 = scalar_lea.vmem %s3, %s1761
        $region86: #{down_block_forward.4} parent=81 // pred_fallthru
          _
        // Predicated region
        $region87: #{down_block_forward.4} parent=81 // pred_check
          %p1763 = pneg %p134
        $region88: #{down_block_forward.4} parent=81 // pred_check_branch
          %1765 = sbr.rel (%p1763) target = $region90
        $region89: #{down_block_forward.4} parent=81 // pred_region
          %p1766 = scmp.lt.s32.totalorder %s17, 1
          %s1767 = scalar_select %p1766, %s17, 1
          %s1768 = smul.addr %s1767, 2
          %s1769 = scalar_lea.vmem %s4, %s1768
        $region90: #{down_block_forward.4} parent=81 // pred_fallthru
          _
      $region82: #{down_block_forward.4} parent=5 // pred_fallthru
        _
    $region6: #{down_block_forward.4} parent=1 // loop_footer
      %s15 = sadd.s32 1, %s11
    $region7: #{down_block_forward.4} parent=1 // loop_footer_branch
      %10 = sbr.rel target = $region3
    $region8: #{down_block_forward.4} parent=1 // loop_exit
      _

</llo_original>
